<compile_context>
chip_gen: v7x
topology: tpu7x:2x2x1
jax: 0.10.0
libtpu: 0.0.40
codegen_flags: <defaults>
</compile_context>

<pallas_src>
import math
import functools

import jax
import jax.numpy as jnp
from jax import lax
from jax.experimental import pallas as pl
from jax.experimental.pallas import tpu as pltpu


# ---------------------------------------------------------------------------
# Kernel 1: fused QKV projection + lane-dense head split (+ 1/sqrt(D) into q).
# ---------------------------------------------------------------------------
def _qkv_proj_kernel(x_ref, w_ref, b_ref, q_ref, k_ref, v_ref, *,
                     n_heads, head_dim, scale):
    C = n_heads * head_dim
    bt = x_ref.shape[1]
    x = x_ref[0].astype(w_ref.dtype)                                    # (bt, C)
    qkv = jnp.dot(x, w_ref[...], preferred_element_type=jnp.float32)    # (bt, 3C) f32
    qkv = qkv + b_ref[...]                                              # (1, 3C) broadcast

    def to_heads(slab):                    # (bt, H*D) -> (H, bt, D), one XLU relayout
        return jnp.transpose(slab.reshape(bt, n_heads, head_dim), (1, 0, 2))

    # One full-block (lane-dense) store per tensor; no per-head masked stores.
    q_ref[0] = to_heads(qkv[:, :C] * scale).astype(q_ref.dtype)
    k_ref[0] = to_heads(qkv[:, C:2 * C]).astype(k_ref.dtype)
    v_ref[0] = to_heads(qkv[:, 2 * C:]).astype(v_ref.dtype)


# ---------------------------------------------------------------------------
# Kernel 2: flash attention, KV loop in-kernel with dynamic (causal) trip count.
# ---------------------------------------------------------------------------
def _flash_attn_kernel(q_ref, k_ref, v_ref, o_ref, *, block_q, block_k):
    qi = pl.program_id(2)
    q = q_ref[0, 0]                                   # (block_q, D), pre-scaled bf16
    head_dim = q.shape[-1]

    def kv_step(kj, carry, masked):
        m_prev, l_prev, acc_prev = carry
        start = pl.multiple_of(kj * block_k, block_k)
        k = k_ref[0, 0, pl.ds(start, block_k), :]     # (block_k, D)
        v = v_ref[0, 0, pl.ds(start, block_k), :]

        # QK^T in NT form — no materialized transpose of K.
        s = lax.dot_general(q, k, (((1,), (1,)), ((), ())),
                            preferred_element_type=jnp.float32)   # (block_q, block_k)
        if masked:
            # Only the diagonal tile is ever masked (block_q == block_k), so the
            # mask is purely relative — no qi/kj offsets, no work off-diagonal.
            row = lax.broadcasted_iota(jnp.int32, s.shape, 0)
            col = lax.broadcasted_iota(jnp.int32, s.shape, 1)
            s = jnp.where(col <= row, s, jnp.float32(-1e30))

        m_new = jnp.maximum(m_prev, jnp.max(s, axis=-1, keepdims=True))
        alpha = jnp.exp(m_prev - m_new)
        p = jnp.exp(s - m_new)                                          # f32
        l_new = alpha * l_prev + jnp.sum(p, axis=-1, keepdims=True)
        acc_new = alpha * acc_prev + jnp.dot(
            p.astype(v.dtype), v, preferred_element_type=jnp.float32)
        return m_new, l_new, acc_new

    carry0 = (jnp.full((block_q, 1), -jnp.inf, jnp.float32),   # running max m
              jnp.zeros((block_q, 1), jnp.float32),            # running sum l
              jnp.zeros((block_q, head_dim), jnp.float32))     # accumulator

    # Off-diagonal (fully unmasked) KV tiles: dynamic trip count == qi, so tiles
    # above the diagonal are never visited at all (no dead grid steps).
    m, l, acc = lax.fori_loop(0, qi, functools.partial(kv_step, masked=False),
                              carry0)
    # Diagonal tile: the only place the causal mask is built / applied.
    m, l, acc = kv_step(qi, (m, l, acc), masked=True)

    inv_l = pl.reciprocal(l, approx=True)
    o_ref[0, 0] = (acc * inv_l).astype(o_ref.dtype)


# ---------------------------------------------------------------------------
# Kernel 3: output projection (single relayout + one wide matmul).
# ---------------------------------------------------------------------------
def _out_proj_kernel(y_ref, w_ref, b_ref, o_ref, *, n_heads, head_dim):
    C = n_heads * head_dim
    bt = y_ref.shape[2]
    # (H, bt, D) -> (bt, H*D): one lane-dense relayout, no per-head copy loop.
    y2d = jnp.transpose(y_ref[0], (1, 0, 2)).reshape(bt, C).astype(w_ref.dtype)
    out = jnp.dot(y2d, w_ref[...], preferred_element_type=jnp.float32) + b_ref[...]
    o_ref[0] = out.astype(o_ref.dtype)


# ---------------------------------------------------------------------------
# Helpers
# ---------------------------------------------------------------------------
def _largest_tile(total, cap, quantum=8):
    t = min(total, cap)
    while total % t:
        t -= quantum
    return t


def _const_spec(shape, *, single_buffer=False):
    """BlockSpec with a constant index_map (weights / biases).

    With single_buffer=True the block is single-buffered (pl.Buffered(1)) —
    useful on v7x (64 MiB VMEM) for large C; guarded for older JAX versions.
    """
    ndim = len(shape)
    index_map = lambda *_: (0,) * ndim
    if single_buffer and hasattr(pl, "Buffered"):
        try:
            return pl.BlockSpec(shape, index_map, pipeline_mode=pl.Buffered(1))
        except TypeError:
            pass
    return pl.BlockSpec(shape, index_map)


# ---------------------------------------------------------------------------
# Wrapper
# ---------------------------------------------------------------------------
def causal_self_attention(x, w_attn, b_attn, w_proj, b_proj, *, n_heads,
                          block_q=None, block_t=None,
                          compute_dtype=jnp.bfloat16,
                          single_buffer_weights=False,
                          vmem_limit_bytes=40 * 1024 * 1024):
    """x: (B, T, C); w_attn: (C, 3C); b_attn: (1, 3C); w_proj: (C, C);
    b_proj: (1, C).  Returns (B, T, C) in x.dtype."""
    B, T, C = x.shape
    assert C % n_heads == 0, "embed_dim must be divisible by num_heads"
    D = C // n_heads
    assert T % 8 == 0, "sequence length must be a multiple of 8"

    if block_q is None:
        # 128 matches the v5e MXU; pass block_q=256 on v6e/v7x when T allows.
        block_q = _largest_tile(T, 128)
    if block_t is None:
        # Projections are HBM-streaming matmuls: big row tiles -> near roofline.
        block_t = _largest_tile(T, 256)
    assert T % block_q == 0 and T % block_t == 0, "tiles must divide T"

    nq = T // block_q
    nt = T // block_t
    scale = 1.0 / math.sqrt(D)

    # bf16 MXU operands (f32 accumulation in the kernels).
    w_attn_c = w_attn.astype(compute_dtype)
    w_proj_c = w_proj.astype(compute_dtype)
    b_attn_f = b_attn.astype(jnp.float32)
    b_proj_f = b_proj.astype(jnp.float32)

    # --- 1) QKV projection (+ head split, + 1/sqrt(D) folded into q) ----------
    q, k, v = pl.pallas_call(
        functools.partial(_qkv_proj_kernel, n_heads=n_heads, head_dim=D,
                          scale=scale),
        out_shape=[jax.ShapeDtypeStruct((B, n_heads, T, D), compute_dtype)] * 3,
        grid_spec=pltpu.PrefetchScalarGridSpec(
            num_scalar_prefetch=0,
            grid=(B, nt),
            in_specs=[
                pl.BlockSpec((1, block_t, C), lambda b, t: (b, t, 0)),
                _const_spec((C, 3 * C), single_buffer=single_buffer_weights),
                _const_spec((1, 3 * C), single_buffer=single_buffer_weights),
            ],
            out_specs=[
                pl.BlockSpec((1, n_heads, block_t, D), lambda b, t: (b, 0, t, 0)),
                pl.BlockSpec((1, n_heads, block_t, D), lambda b, t: (b, 0, t, 0)),
                pl.BlockSpec((1, n_heads, block_t, D), lambda b, t: (b, 0, t, 0)),
            ],
        ),
        compiler_params=pltpu.CompilerParams(
            dimension_semantics=("parallel", "parallel"),
            vmem_limit_bytes=vmem_limit_bytes),
    )(x, w_attn_c, b_attn_f)

    # --- 2) flash attention (in-kernel causal KV loop) -------------------------
    y = pl.pallas_call(
        functools.partial(_flash_attn_kernel, block_q=block_q, block_k=block_q),
        out_shape=jax.ShapeDtypeStruct((B, n_heads, T, D), compute_dtype),
        grid_spec=pltpu.PrefetchScalarGridSpec(
            num_scalar_prefetch=0,
            grid=(B, n_heads, nq),
            in_specs=[
                pl.BlockSpec((1, 1, block_q, D), lambda b, h, i: (b, h, i, 0)),
                # Full K/V row for this (batch, head); constant block index over
                # the innermost q-tile axis -> fetched once, kept resident.
                pl.BlockSpec((1, 1, T, D), lambda b, h, i: (b, h, 0, 0)),
                pl.BlockSpec((1, 1, T, D), lambda b, h, i: (b, h, 0, 0)),
            ],
            out_specs=pl.BlockSpec((1, 1, block_q, D),
                                   lambda b, h, i: (b, h, i, 0)),
        ),
        compiler_params=pltpu.CompilerParams(
            dimension_semantics=("parallel", "parallel", "arbitrary"),
            vmem_limit_bytes=vmem_limit_bytes),
    )(q, k, v)

    # --- 3) output projection --------------------------------------------------
    out = pl.pallas_call(
        functools.partial(_out_proj_kernel, n_heads=n_heads, head_dim=D),
        out_shape=jax.ShapeDtypeStruct((B, T, C), x.dtype),
        grid_spec=pltpu.PrefetchScalarGridSpec(
            num_scalar_prefetch=0,
            grid=(B, nt),
            in_specs=[
                pl.BlockSpec((1, n_heads, block_t, D), lambda b, t: (b, 0, t, 0)),
                _const_spec((C, C), single_buffer=single_buffer_weights),
                _const_spec((1, C), single_buffer=single_buffer_weights),
            ],
            out_specs=pl.BlockSpec((1, block_t, C), lambda b, t: (b, t, 0)),
        ),
        compiler_params=pltpu.CompilerParams(
            dimension_semantics=("parallel", "parallel"),
            vmem_limit_bytes=vmem_limit_bytes),
    )(y, w_proj_c, b_proj_f)

    return out


# ---------------------------------------------------------------------------
# Pure-JAX reference (mirrors the PyTorch module's forward).
# ---------------------------------------------------------------------------
def reference(x, w_attn, b_attn, w_proj, b_proj, n_heads):
    B, T, C = x.shape
    D = C // n_heads
    qkv = x @ w_attn + b_attn[0]
    q, k, v = jnp.split(qkv, 3, axis=-1)
    q = q.reshape(B, T, n_heads, D).transpose(0, 2, 1, 3)
    k = k.reshape(B, T, n_heads, D).transpose(0, 2, 1, 3)
    v = v.reshape(B, T, n_heads, D).transpose(0, 2, 1, 3)
    s = jnp.einsum("bhtd,bhsd->bhts", q, k) / math.sqrt(D)
    mask = jnp.tril(jnp.ones((T, T), dtype=bool))
    s = jnp.where(mask, s, -1e30)
    p = jax.nn.softmax(s, axis=-1)
    y = jnp.einsum("bhts,bhsd->bhtd", p, v)
    y = y.transpose(0, 2, 1, 3).reshape(B, T, C)
    return y @ w_proj + b_proj[0]


if __name__ == "__main__":
    # Small config consistent with the module (n_embd divisible by n_heads);
    # small tiles so the multi-tile causal KV loop path is exercised.
    B, T, C, H = 2, 32, 32, 4
    alpha = 0.5
    key = jax.random.PRNGKey(0)
    kx, kwa, kba, kwp, kbp = jax.random.split(key, 5)

    std = alpha * (1.0 / C) ** 0.5
    x = jax.random.normal(kx, (B, T, C), dtype=jnp.float32)
    w_attn = std * jax.random.normal(kwa, (C, 3 * C), dtype=jnp.float32)
    w_proj = std * jax.random.normal(kwp, (C, C), dtype=jnp.float32)
    # PyTorch nn.Linear default bias init: U(-1/sqrt(fan_in), 1/sqrt(fan_in))
    bound = 1.0 / math.sqrt(C)
    b_attn = jax.random.uniform(kba, (1, 3 * C), jnp.float32, -bound, bound)
    b_proj = jax.random.uniform(kbp, (1, C), jnp.float32, -bound, bound)

    out = causal_self_attention(x, w_attn, b_attn, w_proj, b_proj,
                                n_heads=H, block_q=8, block_t=16)
    out = jax.block_until_ready(out)

    ref = reference(x, w_attn, b_attn, w_proj, b_proj, H)
    assert out.shape == (B, T, C)
    # bf16 MXU operands with f32 accumulation -> loosened tolerance vs f32 ref.
    assert jnp.allclose(out, ref, atol=3e-2, rtol=3e-2), \
        float(jnp.max(jnp.abs(out - ref)))
    print("KERNEL_OK")
</pallas_src>

<mosaic_0001>
module attributes {stable_mosaic.version = 11 : i64} {
  func.func @_qkv_proj_kernel(%arg0: i32, %arg1: i32, %arg2: memref<1x16x32xf32, #tpu.memory_space<vmem>>, %arg3: memref<32x96xbf16, #tpu.memory_space<vmem>>, %arg4: memref<1x96xf32, #tpu.memory_space<vmem>>, %arg5: memref<1x4x16x8xbf16, #tpu.memory_space<vmem>>, %arg6: memref<1x4x16x8xbf16, #tpu.memory_space<vmem>>, %arg7: memref<1x4x16x8xbf16, #tpu.memory_space<vmem>>) attributes {dimension_semantics = [#tpu.dimension_semantics<parallel>, #tpu.dimension_semantics<parallel>], iteration_bounds = array<i64: 2, 2>, scalar_prefetch = 0 : i64, scratch_operands = 0 : i64, tpu.core_type = #tpu.core_type<tc>, window_params = [{transform_indices = @transform_0, window_bounds = array<i64: 1, 16, 32>}, {pipeline_mode = #tpu.pipeline_mode<synchronous>, transform_indices = @transform_1, window_bounds = array<i64: 32, 96>}, {pipeline_mode = #tpu.pipeline_mode<synchronous>, transform_indices = @transform_2, window_bounds = array<i64: 1, 96>}, {transform_indices = @transform_3, window_bounds = array<i64: 1, 4, 16, 8>}, {transform_indices = @transform_4, window_bounds = array<i64: 1, 4, 16, 8>}, {transform_indices = @transform_5, window_bounds = array<i64: 1, 4, 16, 8>}]} {
    %c0 = arith.constant 0 : index
    %c0_0 = arith.constant 0 : index
    %c0_1 = arith.constant 0 : index
    %0 = vector.load %arg2[%c0, %c0_0, %c0_1] : memref<1x16x32xf32, #tpu.memory_space<vmem>>, vector<1x16x32xf32>
    %1 = vector.shape_cast %0 : vector<1x16x32xf32> to vector<16x32xf32>
    %2 = arith.truncf %1 : vector<16x32xf32> to vector<16x32xbf16>
    %c0_2 = arith.constant 0 : index
    %c0_3 = arith.constant 0 : index
    %3 = vector.load %arg3[%c0_2, %c0_3] : memref<32x96xbf16, #tpu.memory_space<vmem>>, vector<32x96xbf16>
    %cst = arith.constant dense<0.000000e+00> : vector<16x96xf32>
    %4 = tpu.matmul %2, %3, %cst {dimension_numbers = #tpu.dot_dimension_numbers<[1], [0], [0], [1], [0, 0, 1, 1], [], []>} : vector<16x32xbf16>, vector<32x96xbf16>, vector<16x96xf32> -> vector<16x96xf32>
    %c0_4 = arith.constant 0 : index
    %c0_5 = arith.constant 0 : index
    %5 = vector.load %arg4[%c0_4, %c0_5] : memref<1x96xf32, #tpu.memory_space<vmem>>, vector<1x96xf32>
    %6 = vector.broadcast %5 : vector<1x96xf32> to vector<16x96xf32>
    %7 = arith.addf %4, %6 : vector<16x96xf32>
    %8 = vector.extract_strided_slice %7 {offsets = [0, 0], sizes = [16, 32], strides = [1, 1]} : vector<16x96xf32> to vector<16x32xf32>
    %cst_6 = arith.constant 0.353553385 : f32
    %9 = vector.broadcast %cst_6 : f32 to vector<16x32xf32>
    %10 = arith.mulf %8, %9 : vector<16x32xf32>
    %11 = vector.shape_cast %10 : vector<16x32xf32> to vector<16x4x8xf32>
    %12 = tpu.transpose %11, [1, 0, 2] : vector<16x4x8xf32> -> vector<4x16x8xf32>
    %13 = arith.truncf %12 : vector<4x16x8xf32> to vector<4x16x8xbf16>
    %c0_7 = arith.constant 0 : index
    %c0_8 = arith.constant 0 : index
    %c0_9 = arith.constant 0 : index
    %c0_10 = arith.constant 0 : index
    %14 = vector.load %arg5[%c0_7, %c0_8, %c0_9, %c0_10] : memref<1x4x16x8xbf16, #tpu.memory_space<vmem>>, vector<1x4x16x8xbf16>
    %15 = vector.shape_cast %14 : vector<1x4x16x8xbf16> to vector<4x16x8xbf16>
    %16 = vector.shape_cast %13 : vector<4x16x8xbf16> to vector<1x4x16x8xbf16>
    tpu.vector_store %arg5[%c0_7, %c0_8, %c0_9, %c0_10], %16 {strides = array<i32>} : memref<1x4x16x8xbf16, #tpu.memory_space<vmem>>, vector<1x4x16x8xbf16>,
    %17 = vector.extract_strided_slice %7 {offsets = [0, 32], sizes = [16, 32], strides = [1, 1]} : vector<16x96xf32> to vector<16x32xf32>
    %18 = vector.shape_cast %17 : vector<16x32xf32> to vector<16x4x8xf32>
    %19 = tpu.transpose %18, [1, 0, 2] : vector<16x4x8xf32> -> vector<4x16x8xf32>
    %20 = arith.truncf %19 : vector<4x16x8xf32> to vector<4x16x8xbf16>
    %c0_11 = arith.constant 0 : index
    %c0_12 = arith.constant 0 : index
    %c0_13 = arith.constant 0 : index
    %c0_14 = arith.constant 0 : index
    %21 = vector.load %arg6[%c0_11, %c0_12, %c0_13, %c0_14] : memref<1x4x16x8xbf16, #tpu.memory_space<vmem>>, vector<1x4x16x8xbf16>
    %22 = vector.shape_cast %21 : vector<1x4x16x8xbf16> to vector<4x16x8xbf16>
    %23 = vector.shape_cast %20 : vector<4x16x8xbf16> to vector<1x4x16x8xbf16>
    tpu.vector_store %arg6[%c0_11, %c0_12, %c0_13, %c0_14], %23 {strides = array<i32>} : memref<1x4x16x8xbf16, #tpu.memory_space<vmem>>, vector<1x4x16x8xbf16>,
    %24 = vector.extract_strided_slice %7 {offsets = [0, 64], sizes = [16, 32], strides = [1, 1]} : vector<16x96xf32> to vector<16x32xf32>
    %25 = vector.shape_cast %24 : vector<16x32xf32> to vector<16x4x8xf32>
    %26 = tpu.transpose %25, [1, 0, 2] : vector<16x4x8xf32> -> vector<4x16x8xf32>
    %27 = arith.truncf %26 : vector<4x16x8xf32> to vector<4x16x8xbf16>
    %c0_15 = arith.constant 0 : index
    %c0_16 = arith.constant 0 : index
    %c0_17 = arith.constant 0 : index
    %c0_18 = arith.constant 0 : index
    %28 = vector.load %arg7[%c0_15, %c0_16, %c0_17, %c0_18] : memref<1x4x16x8xbf16, #tpu.memory_space<vmem>>, vector<1x4x16x8xbf16>
    %29 = vector.shape_cast %28 : vector<1x4x16x8xbf16> to vector<4x16x8xbf16>
    %30 = vector.shape_cast %27 : vector<4x16x8xbf16> to vector<1x4x16x8xbf16>
    tpu.vector_store %arg7[%c0_15, %c0_16, %c0_17, %c0_18], %30 {strides = array<i32>} : memref<1x4x16x8xbf16, #tpu.memory_space<vmem>>, vector<1x4x16x8xbf16>,
    return
  }
  func.func @transform_0(%arg0: i32, %arg1: i32) -> (i32, i32, i32) {
    %c0_i32 = arith.constant 0 : i32
    %c0_i32_0 = arith.constant 0 : i32
    return %arg0, %arg1, %c0_i32 : i32, i32, i32
  }
  func.func @transform_1(%arg0: i32, %arg1: i32) -> (i32, i32) {
    %c0_i32 = arith.constant 0 : i32
    %c0_i32_0 = arith.constant 0 : i32
    %c0_i32_1 = arith.constant 0 : i32
    return %c0_i32, %c0_i32_0 : i32, i32
  }
  func.func @transform_2(%arg0: i32, %arg1: i32) -> (i32, i32) {
    %c0_i32 = arith.constant 0 : i32
    %c0_i32_0 = arith.constant 0 : i32
    %c0_i32_1 = arith.constant 0 : i32
    return %c0_i32, %c0_i32_0 : i32, i32
  }
  func.func @transform_3(%arg0: i32, %arg1: i32) -> (i32, i32, i32, i32) {
    %c0_i32 = arith.constant 0 : i32
    %c0_i32_0 = arith.constant 0 : i32
    %c0_i32_1 = arith.constant 0 : i32
    return %arg0, %c0_i32, %arg1, %c0_i32_0 : i32, i32, i32, i32
  }
  func.func @transform_4(%arg0: i32, %arg1: i32) -> (i32, i32, i32, i32) {
    %c0_i32 = arith.constant 0 : i32
    %c0_i32_0 = arith.constant 0 : i32
    %c0_i32_1 = arith.constant 0 : i32
    return %arg0, %c0_i32, %arg1, %c0_i32_0 : i32, i32, i32, i32
  }
  func.func @transform_5(%arg0: i32, %arg1: i32) -> (i32, i32, i32, i32) {
    %c0_i32 = arith.constant 0 : i32
    %c0_i32_0 = arith.constant 0 : i32
    %c0_i32_1 = arith.constant 0 : i32
    return %arg0, %c0_i32, %arg1, %c0_i32_0 : i32, i32, i32, i32
  }
}

</mosaic_0001>

<llo_original>
// kernel: tpu_custom_call.1
$region0: #{tpu_custom_call.1}
  #allocation0 [shape = 'u32[]', space=smem, size = 0x4, offset = 0x4, fixed_abs, tag = 'smem constant byte address 0x4 - core index']
  #allocation1 [shape = 'u32[144,128]{1,0:T(1,128)}', space=vmem, size = 0x12000, scoped, tag = 'internal scratch']
  %s0 = inlined_call_operand.hbm [shape: f32[2,32,32], index: 0, kind: input, shape index: {}]
  %s1 = inlined_call_operand.hbm [shape: bf16[32,96], index: 1, kind: input, shape index: {}]
  %s2 = inlined_call_operand.vmem [shape: f32[1,96], index: 2, kind: input, shape index: {}]
  %s3 = inlined_call_operand.vmem [shape: bf16[2,4,32,8], index: 3, kind: output, shape index: {0}]
  %s4 = inlined_call_operand.vmem [shape: bf16[2,4,32,8], index: 4, kind: output, shape index: {1}]
  %s5 = inlined_call_operand.vmem [shape: bf16[2,4,32,8], index: 5, kind: output, shape index: {2}]
  %6 = xla_tuple %s3, %s4, %s5
  %s7 = sld [smem:[#allocation0]]
  $region180: #{tpu_custom_call.1} parent=0
    _
  %s9 = ssub.s32 1, %s7
  %s10 = scalar_select 0, %s9, %s7
  $region1: #{tpu_custom_call.1} parent=0
    #allocation2 [shape = 'u8[16384]{0}', space=vmem, size = 0x4000, scoped, tag = 'input window, operand 0']
    #allocation3 [shape = 's32[2]{0}', space=sflag, size = 0x8, scoped, tag = 'scoped memory for tpu_custom_call.1']
    #allocation4 [shape = 'u8[8192]{0}', space=vmem, size = 0x2000, scoped, tag = 'input window, operand 1, single buffered']
    #allocation5 [shape = 's32[1]{0}', space=sflag, size = 0x4, scoped, tag = 'scoped memory for tpu_custom_call.1']
    #allocation6 [shape = 'u8[32768]{0}', space=vmem, size = 0x8000, scoped, tag = 'output window, operand 0']
    #allocation7 [shape = 'u8[32768]{0}', space=vmem, size = 0x8000, scoped, tag = 'output window, operand 1']
    #allocation8 [shape = 'u8[32768]{0}', space=vmem, size = 0x8000, scoped, tag = 'output window, operand 2']
    %11 = vsyncpa [#allocation3], 0
    %s12 = scalar_lea.sflag [#allocation3], 1
    %13 = vsyncpa %s12, 0
    %14 = vsyncpa [#allocation5], 0
    loop: start=0, step=1, limit=6
    $region2: #{tpu_custom_call.1} parent=1 // loop_pre_header
      _
    $region3: #{tpu_custom_call.1} parent=1 // loop_header
      %s16 = sphi 0, %s20
      %p17 = scmp.ge.s32.totalorder %s16, 6
      %s23 = sphi 0, %s35
      %s24 = sphi 0, %s31
      %s25 = sphi 0, %s23
      %s26 = sphi 0, %s24
      %s27 = sphi 0, %s25
      %s28 = sphi 0, %s26
      %s40 = sphi 0, %s42
      %s43 = sphi 0, %s40
      %s44 = sphi 0, %s43
      %s60 = sphi 0, %s44
      %s64 = sphi 0, %s64
      %s66 = sphi 0, %s64
      %s67 = sphi 0, %s66
      %s81 = sphi 0, %s67
      %s85 = sphi 0, %s85
      %s87 = sphi 0, %s85
      %s88 = sphi 0, %s87
      %s102 = sphi 0, %s88
      %s110 = sphi 0, %s112
      %s113 = sphi 0, %s110
      %s114 = sphi 0, %s113
      %s130 = sphi 0, %s114
      %s138 = sphi 0, %s140
      %s141 = sphi 0, %s138
      %s142 = sphi 0, %s141
      %s158 = sphi 0, %s142
      %s166 = sphi 0, %s168
      %s169 = sphi 0, %s166
      %s170 = sphi 0, %s169
      %s186 = sphi 0, %s170
    $region4: #{tpu_custom_call.1} parent=1 // loop_header_branch
      %19 = sbr.rel (%p17) target = $region8
    $region5: #{tpu_custom_call.1} parent=1 // loop_body
      %s21 = ssub.s32 %s16, 1
      %s22 = ssub.s32 %s16, 2
      %s29 = sadd.s32 1, %s24
      %p30 = scmp.ge.s32.totalorder %s29, 2
      %s31 = scalar_select %p30, 0, %s29
      %s32 = sadd.s32 1, %s23
      %s33 = scalar_select %p30, %s32, %s23
      %p34 = scmp.ge.s32.totalorder %s33, 2
      %s35 = scalar_select %p34, 0, %s33
      %s36 = ssub.s32 %s23, %s35
      %s37 = ssub.s32 %s24, %s31
      %s38 = sor.u32 %s36, %s37
      %p39 = scmp.eq.s32.totalorder %s38, 0
      %s41 = sadd.s32 %s40, 1
      %s42 = scalar_select %p39, %s40, %s41
      %p45 = pneg %p39
      %p46 = scmp.eq.s32.totalorder %s16, 3
      %p47 = por %p45, %p46
      %p48 = scmp.ne.s32.totalorder %s40, %s43
      %p49 = scmp.eq.s32.totalorder %s16, 0
      %p50 = por %p48, %p49
      %p51 = scmp.ne.s32.totalorder %s40, %s43
      %p52 = scmp.eq.s32.totalorder %s21, 3
      %p53 = por %p51, %p52
      %p54 = scmp.ne.s32.totalorder %s43, %s44
      %p55 = scmp.eq.s32.totalorder %s21, 0
      %p56 = por %p54, %p55
      %p57 = scmp.ne.s32.totalorder %s43, %s44
      %p58 = scmp.eq.s32.totalorder %s22, 3
      %p59 = por %p57, %p58
      %p61 = scmp.ne.s32.totalorder %s44, %s60
      %p62 = scmp.eq.s32.totalorder %s22, 0
      %p63 = por %p61, %p62
      %s65 = sadd.s32 %s64, 1
      %p68 = scmp.eq.s32.totalorder %s16, 3
      %p69 = scmp.ne.s32.totalorder %s64, %s66
      %p70 = scmp.eq.s32.totalorder %s16, 0
      %p71 = por %p69, %p70
      %p72 = scmp.ne.s32.totalorder %s64, %s66
      %p73 = scmp.eq.s32.totalorder %s21, 3
      %p74 = por %p72, %p73
      %p75 = scmp.ne.s32.totalorder %s66, %s67
      %p76 = scmp.eq.s32.totalorder %s21, 0
      %p77 = por %p75, %p76
      %p78 = scmp.ne.s32.totalorder %s66, %s67
      %p79 = scmp.eq.s32.totalorder %s22, 3
      %p80 = por %p78, %p79
      %p82 = scmp.ne.s32.totalorder %s67, %s81
      %p83 = scmp.eq.s32.totalorder %s22, 0
      %p84 = por %p82, %p83
      %s86 = sadd.s32 %s85, 1
      %p89 = scmp.eq.s32.totalorder %s16, 3
      %p90 = scmp.ne.s32.totalorder %s85, %s87
      %p91 = scmp.eq.s32.totalorder %s16, 0
      %p92 = por %p90, %p91
      %p93 = scmp.ne.s32.totalorder %s85, %s87
      %p94 = scmp.eq.s32.totalorder %s21, 3
      %p95 = por %p93, %p94
      %p96 = scmp.ne.s32.totalorder %s87, %s88
      %p97 = scmp.eq.s32.totalorder %s21, 0
      %p98 = por %p96, %p97
      %p99 = scmp.ne.s32.totalorder %s87, %s88
      %p100 = scmp.eq.s32.totalorder %s22, 3
      %p101 = por %p99, %p100
      %p103 = scmp.ne.s32.totalorder %s88, %s102
      %p104 = scmp.eq.s32.totalorder %s22, 0
      %p105 = por %p103, %p104
      %s106 = ssub.s32 %s23, %s35
      %s107 = ssub.s32 %s24, %s31
      %s108 = sor.u32 %s106, %s107
      %p109 = scmp.eq.s32.totalorder %s108, 0
      %s111 = sadd.s32 %s110, 1
      %s112 = scalar_select %p109, %s110, %s111
      %p115 = pneg %p109
      %p116 = scmp.eq.s32.totalorder %s16, 3
      %p117 = por %p115, %p116
      %p118 = scmp.ne.s32.totalorder %s110, %s113
      %p119 = scmp.eq.s32.totalorder %s16, 0
      %p120 = por %p118, %p119
      %p121 = scmp.ne.s32.totalorder %s110, %s113
      %p122 = scmp.eq.s32.totalorder %s21, 3
      %p123 = por %p121, %p122
      %p124 = scmp.ne.s32.totalorder %s113, %s114
      %p125 = scmp.eq.s32.totalorder %s21, 0
      %p126 = por %p124, %p125
      %p127 = scmp.ne.s32.totalorder %s113, %s114
      %p128 = scmp.eq.s32.totalorder %s22, 3
      %p129 = por %p127, %p128
      %p131 = scmp.ne.s32.totalorder %s114, %s130
      %p132 = scmp.eq.s32.totalorder %s22, 0
      %p133 = por %p131, %p132
      %s134 = ssub.s32 %s23, %s35
      %s135 = ssub.s32 %s24, %s31
      %s136 = sor.u32 %s134, %s135
      %p137 = scmp.eq.s32.totalorder %s136, 0
      %s139 = sadd.s32 %s138, 1
      %s140 = scalar_select %p137, %s138, %s139
      %p143 = pneg %p137
      %p144 = scmp.eq.s32.totalorder %s16, 3
      %p145 = por %p143, %p144
      %p146 = scmp.ne.s32.totalorder %s138, %s141
      %p147 = scmp.eq.s32.totalorder %s16, 0
      %p148 = por %p146, %p147
      %p149 = scmp.ne.s32.totalorder %s138, %s141
      %p150 = scmp.eq.s32.totalorder %s21, 3
      %p151 = por %p149, %p150
      %p152 = scmp.ne.s32.totalorder %s141, %s142
      %p153 = scmp.eq.s32.totalorder %s21, 0
      %p154 = por %p152, %p153
      %p155 = scmp.ne.s32.totalorder %s141, %s142
      %p156 = scmp.eq.s32.totalorder %s22, 3
      %p157 = por %p155, %p156
      %p159 = scmp.ne.s32.totalorder %s142, %s158
      %p160 = scmp.eq.s32.totalorder %s22, 0
      %p161 = por %p159, %p160
      %s162 = ssub.s32 %s23, %s35
      %s163 = ssub.s32 %s24, %s31
      %s164 = sor.u32 %s162, %s163
      %p165 = scmp.eq.s32.totalorder %s164, 0
      %s167 = sadd.s32 %s166, 1
      %s168 = scalar_select %p165, %s166, %s167
      %p171 = pneg %p165
      %p172 = scmp.eq.s32.totalorder %s16, 3
      %p173 = por %p171, %p172
      %p174 = scmp.ne.s32.totalorder %s166, %s169
      %p175 = scmp.eq.s32.totalorder %s16, 0
      %p176 = por %p174, %p175
      %p177 = scmp.ne.s32.totalorder %s166, %s169
      %p178 = scmp.eq.s32.totalorder %s21, 3
      %p179 = por %p177, %p178
      %p180 = scmp.ne.s32.totalorder %s169, %s170
      %p181 = scmp.eq.s32.totalorder %s21, 0
      %p182 = por %p180, %p181
      %p183 = scmp.ne.s32.totalorder %s169, %s170
      %p184 = scmp.eq.s32.totalorder %s22, 3
      %p185 = por %p183, %p184
      %p187 = scmp.ne.s32.totalorder %s170, %s186
      %p188 = scmp.eq.s32.totalorder %s22, 0
      %p189 = por %p187, %p188
      %p190 = scmp.le.s32.totalorder 1, %s16
      %p191 = scmp.lt.s32.totalorder %s16, 5
      %p192 = pnand %p190, %p191
      %p193 = pneg %p192
      // Predicated region
      $region9: #{tpu_custom_call.1} parent=5 // pred_check
        _
      $region10: #{tpu_custom_call.1} parent=5 // pred_check_branch
        %195 = sbr.rel (%p192) target = $region12
      $region11: #{tpu_custom_call.1} parent=5 // pred_region
        %s196 = ssub.s32 %s16, 1
        // Predicated region
        $region13: #{tpu_custom_call.1} parent=11 // pred_check
          %p197 = pneg %p77
        $region14: #{tpu_custom_call.1} parent=11 // pred_check_branch
          %199 = sbr.rel (%p197) target = $region16
        $region15: #{tpu_custom_call.1} parent=11 // pred_region
          %s201 = ssub.s32 256, 256
          %202 = vsyncadd [#allocation5], %s201
          %s203 = sshll.u32 [#allocation4], 4
          %s204 = int_to_ptr.vmem [resolvable:$true] %s203
          %209 = dma.hbm_to_vmem [thread:$0]  %s1, 256, %s204, [#allocation5], 64, 64, 4
        $region16: #{tpu_custom_call.1} parent=11 // pred_fallthru
          _
        // Predicated region
        $region17: #{tpu_custom_call.1} parent=11 // pred_check
          %p210 = pneg %p98
        $region18: #{tpu_custom_call.1} parent=11 // pred_check_branch
          %212 = sbr.rel (%p210) target = $region20
        $region19: #{tpu_custom_call.1} parent=11 // pred_region
          _
        $region20: #{tpu_custom_call.1} parent=11 // pred_fallthru
          _
      $region12: #{tpu_custom_call.1} parent=5 // pred_fallthru
        _
      %p213 = scmp.lt.s32.totalorder %s16, 4
      // Predicated region
      $region21: #{tpu_custom_call.1} parent=5 // pred_check
        %p214 = pneg %p213
      $region22: #{tpu_custom_call.1} parent=5 // pred_check_branch
        %216 = sbr.rel (%p214) target = $region24
      $region23: #{tpu_custom_call.1} parent=5 // pred_region
        // Predicated region
        $region25: #{tpu_custom_call.1} parent=23 // pred_check
          %p217 = pneg %p50
        $region26: #{tpu_custom_call.1} parent=23 // pred_check_branch
          %219 = sbr.rel (%p217) target = $region28
        $region27: #{tpu_custom_call.1} parent=23 // pred_region
          %s220 = sand.u32 %s40, 1
          %s221 = scalar_lea.sflag [#allocation3], %s220
          %s222 = sand.u32 %s40, 1
          %s223 = smul.addr %s222, 16
          %s224 = scalar_lea.vmem [#allocation2], %s223
          %s225 = smul.u32 2, %s24
          %s227 = ssub.s32 256, 256
          %228 = vsyncadd %s221, %s227
          %s229 = smul.addr %s23, 4
          %s230 = sadd.s32 %s225, %s229
          %s231 = smul.addr %s230, 128
          %s232 = scalar_lea.hbm %s0, %s231
          %s233 = sshll.u32 %s224, 4
          %s234 = int_to_ptr.vmem [resolvable:$true] %s233
          %239 = dma.hbm_to_vmem [thread:$0]  %s232, 256, %s234, %s221, 128, 128, 8
        $region28: #{tpu_custom_call.1} parent=23 // pred_fallthru
          _
      $region24: #{tpu_custom_call.1} parent=5 // pred_fallthru
        _
      %p240 = scmp.le.s32.totalorder 1, %s16
      %p241 = scmp.lt.s32.totalorder %s16, 5
      %p242 = pnand %p240, %p241
      %p243 = pneg %p242
      // Predicated region
      $region29: #{tpu_custom_call.1} parent=5 // pred_check
        _
      $region30: #{tpu_custom_call.1} parent=5 // pred_check_branch
        %245 = sbr.rel (%p242) target = $region32
      $region31: #{tpu_custom_call.1} parent=5 // pred_region
        %s246 = ssub.s32 %s16, 1
        %s247 = sand.u32 %s43, 1
        %s248 = scalar_lea.sflag [#allocation3], %s247
        %s249 = sand.u32 %s43, 1
        %s250 = smul.addr %s249, 16
        %s251 = scalar_lea.vmem [#allocation2], %s250
        // Predicated region
        $region33: #{tpu_custom_call.1} parent=31 // pred_check
          %p252 = pneg %p56
        $region34: #{tpu_custom_call.1} parent=31 // pred_check_branch
          %254 = sbr.rel (%p252) target = $region36
        $region35: #{tpu_custom_call.1} parent=31 // pred_region
          %255 = dma.done %s248, 256
        $region36: #{tpu_custom_call.1} parent=31 // pred_fallthru
          _
        // Predicated region
        $region37: #{tpu_custom_call.1} parent=31 // pred_check
          %p256 = pneg %p77
        $region38: #{tpu_custom_call.1} parent=31 // pred_check_branch
          %258 = sbr.rel (%p256) target = $region40
        $region39: #{tpu_custom_call.1} parent=31 // pred_region
          %259 = dma.done [#allocation5], 256
        $region40: #{tpu_custom_call.1} parent=31 // pred_fallthru
          _
        %s260 = sand.u32 %s43, 1
        %s261 = scalar_lea.sflag [#allocation3], %s260
        %s262 = sand.u32 %s43, 1
        %s263 = smul.addr %s262, 16
        %s264 = scalar_lea.vmem [#allocation2], %s263
        %p265 = pneg %p56
        %p266 = pneg %p53
        %p267 = pneg %p77
        %p268 = pneg %p74
        %p269 = pneg %p98
        %p270 = pneg %p95
        %p271 = pneg %p126
        %p272 = pneg %p123
        %s273 = sand.u32 %s113, 1
        %s274 = sand.u32 %s113, 1
        %s275 = smul.addr %s274, 32
        %s276 = scalar_lea.vmem [#allocation6], %s275
        %p277 = pneg %p154
        %p278 = pneg %p151
        %s279 = sand.u32 %s141, 1
        %s280 = sand.u32 %s141, 1
        %s281 = smul.addr %s280, 32
        %s282 = scalar_lea.vmem [#allocation7], %s281
        %p283 = pneg %p182
        %p284 = pneg %p179
        %s285 = sand.u32 %s169, 1
        %s286 = sand.u32 %s169, 1
        %s287 = smul.addr %s286, 32
        %s288 = scalar_lea.vmem [#allocation8], %s287
        %s289 = smul.u32 2, %s26
        %s290 = smul.u32 2, %s26
        %s291 = smul.u32 2, %s26
        %s292 = smul.u32 2, %s26
        %v294 = vld [vmem:[%s251] sm:$0xff]
        %v295 = vld [vmem:[%s251 + $0x8] sm:$0xff]
        %v296 = vpack.c.bf16 %v295, %v294
        %v297 = vld [vmem:[#allocation4] sm:$0xf]
        %v298 = vld [vmem:[#allocation4 + $0x4] sm:$0xf]
        %v299 = vld [vmem:[#allocation4 + $0x8] sm:$0xf]
        %v300 = vld [vmem:[#allocation4 + $0xc] sm:$0xf]
        %v301 = vld [vmem:[%s2] sm:$0x1]
        %v303 = vlaneseq
        %v304 = vshrl.u32 %v303, 7
        %v305 = vsub.s32 0, %v304
        %v306 = vrot.slane %v301, %v305
        %v312 = vunpack.c.l.b16 %v297
        %v313 = vunpack.c.l.b16 %v298
        %v314 = vunpack.c.l.b16 %v299
        %v315 = vunpack.c.l.b16 %v300
        %v316 = vpack.c.b16 %v313, %v312
        %v317 = vpack.c.b16 %v315, %v314
        %vm320 = vcmask 261120
        %v322 = vsel %vm320, %v296, 0
        %324 = vmatprep.subr.bf16.mxu0 0
        %325 = vmatpush1.bf16.msra.mxu0 %v316
        %326 = vmatprep.subr.bf16.mxu0 0
        %327 = vmatpush1.bf16.msra.mxu0 %v317
        %328 = vmatprep.subr.bf16.mxu0 0
        %329 = vmatpush1.bf16.msra.mxu0 0
        %330 = vmatprep.subr.bf16.mxu0 0
        %331 = vmatpush1.bf16.msra.mxu0 0
        %332 = vmatprep.subr.bf16.mxu0 0
        %333 = vmatpush1.bf16.msra.mxu0 0
        %334 = vmatprep.subr.bf16.mxu0 0
        %335 = vmatpush1.bf16.msra.mxu0 0
        %336 = vmatprep.subr.bf16.mxu0 0
        %337 = vmatpush1.bf16.msra.mxu0 0
        %338 = vmatprep.subr.bf16.mxu0 0
        %339 = vmatpush1.bf16.msra.mxu0 0
        %340 = vmatprep.subr.bf16.mxu0 0
        %341 = vmatpush1.bf16.msra.mxu0 0
        %342 = vmatprep.subr.bf16.mxu0 0
        %343 = vmatpush1.bf16.msra.mxu0 0
        %344 = vmatprep.subr.bf16.mxu0 0
        %345 = vmatpush1.bf16.msra.mxu0 0
        %346 = vmatprep.subr.bf16.mxu0 0
        %347 = vmatpush1.bf16.msra.mxu0 0
        %348 = vmatprep.subr.bf16.mxu0 0
        %349 = vmatpush1.bf16.msra.mxu0 0
        %350 = vmatprep.subr.bf16.mxu0 0
        %351 = vmatpush1.bf16.msra.mxu0 0
        %352 = vmatprep.subr.bf16.mxu0 0
        %353 = vmatpush1.bf16.msra.mxu0 0
        %354 = vmatprep.subr.bf16.mxu0 0
        %355 = vmatpush1.bf16.msra.mxu0 0
        %356 = vmatprep.mubr.bf16.mxu0 0
        %357 = vmatmul.mubr.bf16.gmra.mrb[0].mxu0 %v322
        %v358 = vpop.f32.mrb[0].mxu0
        %v359 = vadd.f32 %v306, %v358
        %v360 = vpop.f32.mrb[0].mxu0
        %v361 = vpop.f32.mrb[0].mxu0
        %v362 = vadd.f32 %v306, %v361
        %v363 = vpop.f32.mrb[0].mxu0
        %364 = vdwg.mxu0
        %v365 = vmul.f32 %v359, 0.35355338
        %v366 = vmul.f32 %v362, 0.35355338
        %369 = vrot.lane.b32.xlu0 %v365, 120
        %v370 = vpop.permute.xlu0 %369
        %371 = vrot.lane.b32.xlu0 %v366, 120
        %v372 = vpop.permute.xlu0 %371
        %375 = vrot.lane.b32.xlu0 %v365, 112
        %v376 = vpop.permute.xlu0 %375
        %377 = vrot.lane.b32.xlu0 %v366, 112
        %v378 = vpop.permute.xlu0 %377
        %381 = vrot.lane.b32.xlu0 %v365, 104
        %v382 = vpop.permute.xlu0 %381
        %383 = vrot.lane.b32.xlu0 %v366, 104
        %v384 = vpop.permute.xlu0 %383
        %v387 = vcombine.low %v365, %v376
        %v388 = vcombine.high %v365, %v376
        %v390 = vunpack.c.l.s4 1983009808
        %v391 = vunpack.c.0.s8 %v390
        %v392 = vlaneseq
        %v393 = vshrl.u32 %v392, 7
        %v394 = vsub.s32 %v391, %v393
        %v395 = vrot.slane %v387, %v394
        %v397 = vunpack.c.l.s4 1983009808
        %v398 = vunpack.c.0.s8 %v397
        %v399 = vlaneseq
        %v400 = vshrl.u32 %v399, 7
        %v401 = vsub.s32 %v398, %v400
        %v402 = vrot.slane %v388, %v401
        %v403 = vcombine.low %v370, %v382
        %v404 = vcombine.high %v370, %v382
        %v406 = vunpack.c.l.s4 1983009808
        %v407 = vunpack.c.0.s8 %v406
        %v408 = vlaneseq
        %v409 = vshrl.u32 %v408, 7
        %v410 = vsub.s32 %v407, %v409
        %v411 = vrot.slane %v403, %v410
        %v413 = vunpack.c.l.s4 1983009808
        %v414 = vunpack.c.0.s8 %v413
        %v415 = vlaneseq
        %v416 = vshrl.u32 %v415, 7
        %v417 = vsub.s32 %v414, %v416
        %v418 = vrot.slane %v404, %v417
        %v419 = vcombine.low %v395, %v411
        %v420 = vcombine.high %v395, %v411
        %v422 = vunpack.c.l.s4 1934713408
        %v423 = vunpack.c.0.s8 %v422
        %v424 = vlaneseq
        %v425 = vshrl.u32 %v424, 7
        %v426 = vsub.s32 %v423, %v425
        %v427 = vrot.slane %v419, %v426
        %v429 = vunpack.c.l.s4 1934713408
        %v430 = vunpack.c.0.s8 %v429
        %v431 = vlaneseq
        %v432 = vshrl.u32 %v431, 7
        %v433 = vsub.s32 %v430, %v432
        %v434 = vrot.slane %v420, %v433
        %v435 = vcombine.low %v402, %v418
        %v436 = vcombine.high %v402, %v418
        %v438 = vunpack.c.l.s4 1934713408
        %v439 = vunpack.c.0.s8 %v438
        %v440 = vlaneseq
        %v441 = vshrl.u32 %v440, 7
        %v442 = vsub.s32 %v439, %v441
        %v443 = vrot.slane %v435, %v442
        %v445 = vunpack.c.l.s4 1934713408
        %v446 = vunpack.c.0.s8 %v445
        %v447 = vlaneseq
        %v448 = vshrl.u32 %v447, 7
        %v449 = vsub.s32 %v446, %v448
        %v450 = vrot.slane %v436, %v449
        %v451 = vcombine.high %v427, 0.0
        %v452 = vcombine.high %v434, 0.0
        %v453 = vcombine.high %v443, 0.0
        %v454 = vcombine.high %v450, 0.0
        %v455 = vcombine.low %v366, %v378
        %v456 = vcombine.high %v366, %v378
        %v458 = vunpack.c.l.s4 1983009808
        %v459 = vunpack.c.0.s8 %v458
        %v460 = vlaneseq
        %v461 = vshrl.u32 %v460, 7
        %v462 = vsub.s32 %v459, %v461
        %v463 = vrot.slane %v455, %v462
        %v465 = vunpack.c.l.s4 1983009808
        %v466 = vunpack.c.0.s8 %v465
        %v467 = vlaneseq
        %v468 = vshrl.u32 %v467, 7
        %v469 = vsub.s32 %v466, %v468
        %v470 = vrot.slane %v456, %v469
        %v471 = vcombine.low %v372, %v384
        %v472 = vcombine.high %v372, %v384
        %v474 = vunpack.c.l.s4 1983009808
        %v475 = vunpack.c.0.s8 %v474
        %v476 = vlaneseq
        %v477 = vshrl.u32 %v476, 7
        %v478 = vsub.s32 %v475, %v477
        %v479 = vrot.slane %v471, %v478
        %v481 = vunpack.c.l.s4 1983009808
        %v482 = vunpack.c.0.s8 %v481
        %v483 = vlaneseq
        %v484 = vshrl.u32 %v483, 7
        %v485 = vsub.s32 %v482, %v484
        %v486 = vrot.slane %v472, %v485
        %v487 = vcombine.low %v463, %v479
        %v488 = vcombine.high %v463, %v479
        %v490 = vunpack.c.l.s4 1934713408
        %v491 = vunpack.c.0.s8 %v490
        %v492 = vlaneseq
        %v493 = vshrl.u32 %v492, 7
        %v494 = vsub.s32 %v491, %v493
        %v495 = vrot.slane %v487, %v494
        %v497 = vunpack.c.l.s4 1934713408
        %v498 = vunpack.c.0.s8 %v497
        %v499 = vlaneseq
        %v500 = vshrl.u32 %v499, 7
        %v501 = vsub.s32 %v498, %v500
        %v502 = vrot.slane %v488, %v501
        %v503 = vcombine.low %v470, %v486
        %v504 = vcombine.high %v470, %v486
        %v506 = vunpack.c.l.s4 1934713408
        %v507 = vunpack.c.0.s8 %v506
        %v508 = vlaneseq
        %v509 = vshrl.u32 %v508, 7
        %v510 = vsub.s32 %v507, %v509
        %v511 = vrot.slane %v503, %v510
        %v513 = vunpack.c.l.s4 1934713408
        %v514 = vunpack.c.0.s8 %v513
        %v515 = vlaneseq
        %v516 = vshrl.u32 %v515, 7
        %v517 = vsub.s32 %v514, %v516
        %v518 = vrot.slane %v504, %v517
        %v519 = vcombine.high %v495, 0.0
        %v520 = vcombine.high %v502, 0.0
        %v521 = vcombine.high %v511, 0.0
        %v522 = vcombine.high %v518, 0.0
        %v523 = vcombine.low %v427, %v434
        %v525 = vunpack.c.l.s4 1983009808
        %v526 = vunpack.c.0.s8 %v525
        %v527 = vlaneseq
        %v528 = vshrl.u32 %v527, 7
        %v529 = vsub.s32 %v526, %v528
        %v530 = vrot.slane %v523, %v529
        %v531 = vcombine.low %v451, %v452
        %v533 = vunpack.c.l.s4 1983009808
        %v534 = vunpack.c.0.s8 %v533
        %v535 = vlaneseq
        %v536 = vshrl.u32 %v535, 7
        %v537 = vsub.s32 %v534, %v536
        %v538 = vrot.slane %v531, %v537
        %v539 = vcombine.low %v443, %v450
        %v541 = vunpack.c.l.s4 1983009808
        %v542 = vunpack.c.0.s8 %v541
        %v543 = vlaneseq
        %v544 = vshrl.u32 %v543, 7
        %v545 = vsub.s32 %v542, %v544
        %v546 = vrot.slane %v539, %v545
        %v547 = vcombine.low %v453, %v454
        %v549 = vunpack.c.l.s4 1983009808
        %v550 = vunpack.c.0.s8 %v549
        %v551 = vlaneseq
        %v552 = vshrl.u32 %v551, 7
        %v553 = vsub.s32 %v550, %v552
        %v554 = vrot.slane %v547, %v553
        %v555 = vcombine.low %v530, %v538
        %v556 = vcombine.high %v530, %v538
        %v558 = vunpack.c.l.s4 1934713408
        %v559 = vunpack.c.0.s8 %v558
        %v560 = vlaneseq
        %v561 = vshrl.u32 %v560, 7
        %v562 = vsub.s32 %v559, %v561
        %v563 = vrot.slane %v555, %v562
        %v565 = vunpack.c.l.s4 1934713408
        %v566 = vunpack.c.0.s8 %v565
        %v567 = vlaneseq
        %v568 = vshrl.u32 %v567, 7
        %v569 = vsub.s32 %v566, %v568
        %v570 = vrot.slane %v556, %v569
        %v571 = vcombine.low %v546, %v554
        %v572 = vcombine.high %v546, %v554
        %v574 = vunpack.c.l.s4 1934713408
        %v575 = vunpack.c.0.s8 %v574
        %v576 = vlaneseq
        %v577 = vshrl.u32 %v576, 7
        %v578 = vsub.s32 %v575, %v577
        %v579 = vrot.slane %v571, %v578
        %v581 = vunpack.c.l.s4 1934713408
        %v582 = vunpack.c.0.s8 %v581
        %v583 = vlaneseq
        %v584 = vshrl.u32 %v583, 7
        %v585 = vsub.s32 %v582, %v584
        %v586 = vrot.slane %v572, %v585
        %v587 = vcombine.low %v563, %v579
        %v588 = vcombine.high %v563, %v579
        %v589 = vcombine.low %v570, %v586
        %v590 = vcombine.high %v570, %v586
        %v591 = vcombine.low %v495, %v502
        %v593 = vunpack.c.l.s4 1983009808
        %v594 = vunpack.c.0.s8 %v593
        %v595 = vlaneseq
        %v596 = vshrl.u32 %v595, 7
        %v597 = vsub.s32 %v594, %v596
        %v598 = vrot.slane %v591, %v597
        %v599 = vcombine.low %v519, %v520
        %v601 = vunpack.c.l.s4 1983009808
        %v602 = vunpack.c.0.s8 %v601
        %v603 = vlaneseq
        %v604 = vshrl.u32 %v603, 7
        %v605 = vsub.s32 %v602, %v604
        %v606 = vrot.slane %v599, %v605
        %v607 = vcombine.low %v511, %v518
        %v609 = vunpack.c.l.s4 1983009808
        %v610 = vunpack.c.0.s8 %v609
        %v611 = vlaneseq
        %v612 = vshrl.u32 %v611, 7
        %v613 = vsub.s32 %v610, %v612
        %v614 = vrot.slane %v607, %v613
        %v615 = vcombine.low %v521, %v522
        %v617 = vunpack.c.l.s4 1983009808
        %v618 = vunpack.c.0.s8 %v617
        %v619 = vlaneseq
        %v620 = vshrl.u32 %v619, 7
        %v621 = vsub.s32 %v618, %v620
        %v622 = vrot.slane %v615, %v621
        %v623 = vcombine.low %v598, %v606
        %v624 = vcombine.high %v598, %v606
        %v626 = vunpack.c.l.s4 1934713408
        %v627 = vunpack.c.0.s8 %v626
        %v628 = vlaneseq
        %v629 = vshrl.u32 %v628, 7
        %v630 = vsub.s32 %v627, %v629
        %v631 = vrot.slane %v623, %v630
        %v633 = vunpack.c.l.s4 1934713408
        %v634 = vunpack.c.0.s8 %v633
        %v635 = vlaneseq
        %v636 = vshrl.u32 %v635, 7
        %v637 = vsub.s32 %v634, %v636
        %v638 = vrot.slane %v624, %v637
        %v639 = vcombine.low %v614, %v622
        %v640 = vcombine.high %v614, %v622
        %v642 = vunpack.c.l.s4 1934713408
        %v643 = vunpack.c.0.s8 %v642
        %v644 = vlaneseq
        %v645 = vshrl.u32 %v644, 7
        %v646 = vsub.s32 %v643, %v645
        %v647 = vrot.slane %v639, %v646
        %v649 = vunpack.c.l.s4 1934713408
        %v650 = vunpack.c.0.s8 %v649
        %v651 = vlaneseq
        %v652 = vshrl.u32 %v651, 7
        %v653 = vsub.s32 %v650, %v652
        %v654 = vrot.slane %v640, %v653
        %v655 = vcombine.low %v631, %v647
        %v656 = vcombine.high %v631, %v647
        %v657 = vcombine.low %v638, %v654
        %v658 = vcombine.high %v638, %v654
        %v659 = vpack.c.bf16 %v655, %v587
        %v660 = vpack.c.bf16 %v656, %v588
        %v661 = vpack.c.bf16 %v657, %v589
        %v662 = vpack.c.bf16 %v658, %v590
        %v667 = vunpack.c.l.b16 %v659
        %v668 = vunpack.c.h.b16 %v659
        %v669 = vunpack.c.l.b16 %v660
        %v670 = vunpack.c.h.b16 %v660
        %v671 = vunpack.c.l.b16 %v661
        %v672 = vunpack.c.h.b16 %v661
        %v673 = vunpack.c.l.b16 %v662
        %v674 = vunpack.c.h.b16 %v662
        %v675 = vpack.c.b16 %v667, %v667
        %v676 = vpack.c.b16 %v668, %v668
        %v677 = vpack.c.b16 %v669, %v669
        %v678 = vpack.c.b16 %v670, %v670
        %v679 = vpack.c.b16 %v671, %v671
        %v680 = vpack.c.b16 %v672, %v672
        %v681 = vpack.c.b16 %v673, %v673
        %v682 = vpack.c.b16 %v674, %v674
        %vm691 = vcmask 60416
        %692 = vst.msk [vmem:[%s276] sm:$0xf] %vm691, %v675
        %693 = vst.msk [vmem:[%s276 + $0x4] sm:$0xf] %vm691, %v676
        %694 = vst.msk [vmem:[%s276 + $0x8] sm:$0xf] %vm691, %v677
        %695 = vst.msk [vmem:[%s276 + $0xc] sm:$0xf] %vm691, %v678
        %696 = vst.msk [vmem:[%s276 + $0x10] sm:$0xf] %vm691, %v679
        %697 = vst.msk [vmem:[%s276 + $0x14] sm:$0xf] %vm691, %v680
        %698 = vst.msk [vmem:[%s276 + $0x18] sm:$0xf] %vm691, %v681
        %699 = vst.msk [vmem:[%s276 + $0x1c] sm:$0xf] %vm691, %v682
        %702 = vrot.lane.b32.xlu0 %v359, 120
        %v703 = vpop.permute.xlu0 %702
        %704 = vrot.lane.b32.xlu0 %v362, 120
        %v705 = vpop.permute.xlu0 %704
        %706 = vrot.lane.b32.xlu0 %v359, 112
        %v707 = vpop.permute.xlu0 %706
        %708 = vrot.lane.b32.xlu0 %v362, 112
        %v709 = vpop.permute.xlu0 %708
        %710 = vrot.lane.b32.xlu0 %v359, 104
        %v711 = vpop.permute.xlu0 %710
        %712 = vrot.lane.b32.xlu0 %v362, 104
        %v713 = vpop.permute.xlu0 %712
        %714 = vrot.lane.b32.xlu0 %v359, 96
        %v715 = vpop.permute.xlu0 %714
        %716 = vrot.lane.b32.xlu0 %v362, 96
        %v717 = vpop.permute.xlu0 %716
        %718 = vrot.lane.b32.xlu0 %v703, 96
        %v719 = vpop.permute.xlu0 %718
        %720 = vrot.lane.b32.xlu0 %v705, 96
        %v721 = vpop.permute.xlu0 %720
        %722 = vrot.lane.b32.xlu0 %v707, 96
        %v723 = vpop.permute.xlu0 %722
        %724 = vrot.lane.b32.xlu0 %v709, 96
        %v725 = vpop.permute.xlu0 %724
        %726 = vrot.lane.b32.xlu0 %v711, 96
        %v727 = vpop.permute.xlu0 %726
        %728 = vrot.lane.b32.xlu0 %v713, 96
        %v729 = vpop.permute.xlu0 %728
        %v738 = vcombine.low %v715, %v723
        %v739 = vcombine.high %v715, %v723
        %v741 = vunpack.c.l.s4 1983009808
        %v742 = vunpack.c.0.s8 %v741
        %v743 = vlaneseq
        %v744 = vshrl.u32 %v743, 7
        %v745 = vsub.s32 %v742, %v744
        %v746 = vrot.slane %v738, %v745
        %v748 = vunpack.c.l.s4 1983009808
        %v749 = vunpack.c.0.s8 %v748
        %v750 = vlaneseq
        %v751 = vshrl.u32 %v750, 7
        %v752 = vsub.s32 %v749, %v751
        %v753 = vrot.slane %v739, %v752
        %v754 = vcombine.low %v719, %v727
        %v755 = vcombine.high %v719, %v727
        %v757 = vunpack.c.l.s4 1983009808
        %v758 = vunpack.c.0.s8 %v757
        %v759 = vlaneseq
        %v760 = vshrl.u32 %v759, 7
        %v761 = vsub.s32 %v758, %v760
        %v762 = vrot.slane %v754, %v761
        %v764 = vunpack.c.l.s4 1983009808
        %v765 = vunpack.c.0.s8 %v764
        %v766 = vlaneseq
        %v767 = vshrl.u32 %v766, 7
        %v768 = vsub.s32 %v765, %v767
        %v769 = vrot.slane %v755, %v768
        %v770 = vcombine.low %v746, %v762
        %v771 = vcombine.high %v746, %v762
        %v773 = vunpack.c.l.s4 1934713408
        %v774 = vunpack.c.0.s8 %v773
        %v775 = vlaneseq
        %v776 = vshrl.u32 %v775, 7
        %v777 = vsub.s32 %v774, %v776
        %v778 = vrot.slane %v770, %v777
        %v780 = vunpack.c.l.s4 1934713408
        %v781 = vunpack.c.0.s8 %v780
        %v782 = vlaneseq
        %v783 = vshrl.u32 %v782, 7
        %v784 = vsub.s32 %v781, %v783
        %v785 = vrot.slane %v771, %v784
        %v786 = vcombine.low %v753, %v769
        %v787 = vcombine.high %v753, %v769
        %v789 = vunpack.c.l.s4 1934713408
        %v790 = vunpack.c.0.s8 %v789
        %v791 = vlaneseq
        %v792 = vshrl.u32 %v791, 7
        %v793 = vsub.s32 %v790, %v792
        %v794 = vrot.slane %v786, %v793
        %v796 = vunpack.c.l.s4 1934713408
        %v797 = vunpack.c.0.s8 %v796
        %v798 = vlaneseq
        %v799 = vshrl.u32 %v798, 7
        %v800 = vsub.s32 %v797, %v799
        %v801 = vrot.slane %v787, %v800
        %v802 = vcombine.high %v778, 0.0
        %v803 = vcombine.high %v785, 0.0
        %v804 = vcombine.high %v794, 0.0
        %v805 = vcombine.high %v801, 0.0
        %v806 = vcombine.low %v717, %v725
        %v807 = vcombine.high %v717, %v725
        %v809 = vunpack.c.l.s4 1983009808
        %v810 = vunpack.c.0.s8 %v809
        %v811 = vlaneseq
        %v812 = vshrl.u32 %v811, 7
        %v813 = vsub.s32 %v810, %v812
        %v814 = vrot.slane %v806, %v813
        %v816 = vunpack.c.l.s4 1983009808
        %v817 = vunpack.c.0.s8 %v816
        %v818 = vlaneseq
        %v819 = vshrl.u32 %v818, 7
        %v820 = vsub.s32 %v817, %v819
        %v821 = vrot.slane %v807, %v820
        %v822 = vcombine.low %v721, %v729
        %v823 = vcombine.high %v721, %v729
        %v825 = vunpack.c.l.s4 1983009808
        %v826 = vunpack.c.0.s8 %v825
        %v827 = vlaneseq
        %v828 = vshrl.u32 %v827, 7
        %v829 = vsub.s32 %v826, %v828
        %v830 = vrot.slane %v822, %v829
        %v832 = vunpack.c.l.s4 1983009808
        %v833 = vunpack.c.0.s8 %v832
        %v834 = vlaneseq
        %v835 = vshrl.u32 %v834, 7
        %v836 = vsub.s32 %v833, %v835
        %v837 = vrot.slane %v823, %v836
        %v838 = vcombine.low %v814, %v830
        %v839 = vcombine.high %v814, %v830
        %v841 = vunpack.c.l.s4 1934713408
        %v842 = vunpack.c.0.s8 %v841
        %v843 = vlaneseq
        %v844 = vshrl.u32 %v843, 7
        %v845 = vsub.s32 %v842, %v844
        %v846 = vrot.slane %v838, %v845
        %v848 = vunpack.c.l.s4 1934713408
        %v849 = vunpack.c.0.s8 %v848
        %v850 = vlaneseq
        %v851 = vshrl.u32 %v850, 7
        %v852 = vsub.s32 %v849, %v851
        %v853 = vrot.slane %v839, %v852
        %v854 = vcombine.low %v821, %v837
        %v855 = vcombine.high %v821, %v837
        %v857 = vunpack.c.l.s4 1934713408
        %v858 = vunpack.c.0.s8 %v857
        %v859 = vlaneseq
        %v860 = vshrl.u32 %v859, 7
        %v861 = vsub.s32 %v858, %v860
        %v862 = vrot.slane %v854, %v861
        %v864 = vunpack.c.l.s4 1934713408
        %v865 = vunpack.c.0.s8 %v864
        %v866 = vlaneseq
        %v867 = vshrl.u32 %v866, 7
        %v868 = vsub.s32 %v865, %v867
        %v869 = vrot.slane %v855, %v868
        %v870 = vcombine.high %v846, 0.0
        %v871 = vcombine.high %v853, 0.0
        %v872 = vcombine.high %v862, 0.0
        %v873 = vcombine.high %v869, 0.0
        %v874 = vcombine.low %v778, %v785
        %v876 = vunpack.c.l.s4 1983009808
        %v877 = vunpack.c.0.s8 %v876
        %v878 = vlaneseq
        %v879 = vshrl.u32 %v878, 7
        %v880 = vsub.s32 %v877, %v879
        %v881 = vrot.slane %v874, %v880
        %v882 = vcombine.low %v802, %v803
        %v884 = vunpack.c.l.s4 1983009808
        %v885 = vunpack.c.0.s8 %v884
        %v886 = vlaneseq
        %v887 = vshrl.u32 %v886, 7
        %v888 = vsub.s32 %v885, %v887
        %v889 = vrot.slane %v882, %v888
        %v890 = vcombine.low %v794, %v801
        %v892 = vunpack.c.l.s4 1983009808
        %v893 = vunpack.c.0.s8 %v892
        %v894 = vlaneseq
        %v895 = vshrl.u32 %v894, 7
        %v896 = vsub.s32 %v893, %v895
        %v897 = vrot.slane %v890, %v896
        %v898 = vcombine.low %v804, %v805
        %v900 = vunpack.c.l.s4 1983009808
        %v901 = vunpack.c.0.s8 %v900
        %v902 = vlaneseq
        %v903 = vshrl.u32 %v902, 7
        %v904 = vsub.s32 %v901, %v903
        %v905 = vrot.slane %v898, %v904
        %v906 = vcombine.low %v881, %v889
        %v907 = vcombine.high %v881, %v889
        %v909 = vunpack.c.l.s4 1934713408
        %v910 = vunpack.c.0.s8 %v909
        %v911 = vlaneseq
        %v912 = vshrl.u32 %v911, 7
        %v913 = vsub.s32 %v910, %v912
        %v914 = vrot.slane %v906, %v913
        %v916 = vunpack.c.l.s4 1934713408
        %v917 = vunpack.c.0.s8 %v916
        %v918 = vlaneseq
        %v919 = vshrl.u32 %v918, 7
        %v920 = vsub.s32 %v917, %v919
        %v921 = vrot.slane %v907, %v920
        %v922 = vcombine.low %v897, %v905
        %v923 = vcombine.high %v897, %v905
        %v925 = vunpack.c.l.s4 1934713408
        %v926 = vunpack.c.0.s8 %v925
        %v927 = vlaneseq
        %v928 = vshrl.u32 %v927, 7
        %v929 = vsub.s32 %v926, %v928
        %v930 = vrot.slane %v922, %v929
        %v932 = vunpack.c.l.s4 1934713408
        %v933 = vunpack.c.0.s8 %v932
        %v934 = vlaneseq
        %v935 = vshrl.u32 %v934, 7
        %v936 = vsub.s32 %v933, %v935
        %v937 = vrot.slane %v923, %v936
        %v938 = vcombine.low %v914, %v930
        %v939 = vcombine.high %v914, %v930
        %v940 = vcombine.low %v921, %v937
        %v941 = vcombine.high %v921, %v937
        %v942 = vcombine.low %v846, %v853
        %v944 = vunpack.c.l.s4 1983009808
        %v945 = vunpack.c.0.s8 %v944
        %v946 = vlaneseq
        %v947 = vshrl.u32 %v946, 7
        %v948 = vsub.s32 %v945, %v947
        %v949 = vrot.slane %v942, %v948
        %v950 = vcombine.low %v870, %v871
        %v952 = vunpack.c.l.s4 1983009808
        %v953 = vunpack.c.0.s8 %v952
        %v954 = vlaneseq
        %v955 = vshrl.u32 %v954, 7
        %v956 = vsub.s32 %v953, %v955
        %v957 = vrot.slane %v950, %v956
        %v958 = vcombine.low %v862, %v869
        %v960 = vunpack.c.l.s4 1983009808
        %v961 = vunpack.c.0.s8 %v960
        %v962 = vlaneseq
        %v963 = vshrl.u32 %v962, 7
        %v964 = vsub.s32 %v961, %v963
        %v965 = vrot.slane %v958, %v964
        %v966 = vcombine.low %v872, %v873
        %v968 = vunpack.c.l.s4 1983009808
        %v969 = vunpack.c.0.s8 %v968
        %v970 = vlaneseq
        %v971 = vshrl.u32 %v970, 7
        %v972 = vsub.s32 %v969, %v971
        %v973 = vrot.slane %v966, %v972
        %v974 = vcombine.low %v949, %v957
        %v975 = vcombine.high %v949, %v957
        %v977 = vunpack.c.l.s4 1934713408
        %v978 = vunpack.c.0.s8 %v977
        %v979 = vlaneseq
        %v980 = vshrl.u32 %v979, 7
        %v981 = vsub.s32 %v978, %v980
        %v982 = vrot.slane %v974, %v981
        %v984 = vunpack.c.l.s4 1934713408
        %v985 = vunpack.c.0.s8 %v984
        %v986 = vlaneseq
        %v987 = vshrl.u32 %v986, 7
        %v988 = vsub.s32 %v985, %v987
        %v989 = vrot.slane %v975, %v988
        %v990 = vcombine.low %v965, %v973
        %v991 = vcombine.high %v965, %v973
        %v993 = vunpack.c.l.s4 1934713408
        %v994 = vunpack.c.0.s8 %v993
        %v995 = vlaneseq
        %v996 = vshrl.u32 %v995, 7
        %v997 = vsub.s32 %v994, %v996
        %v998 = vrot.slane %v990, %v997
        %v1000 = vunpack.c.l.s4 1934713408
        %v1001 = vunpack.c.0.s8 %v1000
        %v1002 = vlaneseq
        %v1003 = vshrl.u32 %v1002, 7
        %v1004 = vsub.s32 %v1001, %v1003
        %v1005 = vrot.slane %v991, %v1004
        %v1006 = vcombine.low %v982, %v998
        %v1007 = vcombine.high %v982, %v998
        %v1008 = vcombine.low %v989, %v1005
        %v1009 = vcombine.high %v989, %v1005
        %v1010 = vpack.c.bf16 %v1006, %v938
        %v1011 = vpack.c.bf16 %v1007, %v939
        %v1012 = vpack.c.bf16 %v1008, %v940
        %v1013 = vpack.c.bf16 %v1009, %v941
        %v1018 = vunpack.c.l.b16 %v1010
        %v1019 = vunpack.c.h.b16 %v1010
        %v1020 = vunpack.c.l.b16 %v1011
        %v1021 = vunpack.c.h.b16 %v1011
        %v1022 = vunpack.c.l.b16 %v1012
        %v1023 = vunpack.c.h.b16 %v1012
        %v1024 = vunpack.c.l.b16 %v1013
        %v1025 = vunpack.c.h.b16 %v1013
        %v1026 = vpack.c.b16 %v1018, %v1018
        %v1027 = vpack.c.b16 %v1019, %v1019
        %v1028 = vpack.c.b16 %v1020, %v1020
        %v1029 = vpack.c.b16 %v1021, %v1021
        %v1030 = vpack.c.b16 %v1022, %v1022
        %v1031 = vpack.c.b16 %v1023, %v1023
        %v1032 = vpack.c.b16 %v1024, %v1024
        %v1033 = vpack.c.b16 %v1025, %v1025
        %1042 = vst.msk [vmem:[%s282] sm:$0xf] %vm691, %v1026
        %1043 = vst.msk [vmem:[%s282 + $0x4] sm:$0xf] %vm691, %v1027
        %1044 = vst.msk [vmem:[%s282 + $0x8] sm:$0xf] %vm691, %v1028
        %1045 = vst.msk [vmem:[%s282 + $0xc] sm:$0xf] %vm691, %v1029
        %1046 = vst.msk [vmem:[%s282 + $0x10] sm:$0xf] %vm691, %v1030
        %1047 = vst.msk [vmem:[%s282 + $0x14] sm:$0xf] %vm691, %v1031
        %1048 = vst.msk [vmem:[%s282 + $0x18] sm:$0xf] %vm691, %v1032
        %1049 = vst.msk [vmem:[%s282 + $0x1c] sm:$0xf] %vm691, %v1033
        %1050 = vrot.lane.b32.xlu0 %v359, 64
        %v1051 = vpop.permute.xlu0 %1050
        %1052 = vrot.lane.b32.xlu0 %v362, 64
        %v1053 = vpop.permute.xlu0 %1052
        %1054 = vrot.lane.b32.xlu0 %v703, 64
        %v1055 = vpop.permute.xlu0 %1054
        %1056 = vrot.lane.b32.xlu0 %v705, 64
        %v1057 = vpop.permute.xlu0 %1056
        %1058 = vrot.lane.b32.xlu0 %v707, 64
        %v1059 = vpop.permute.xlu0 %1058
        %1060 = vrot.lane.b32.xlu0 %v709, 64
        %v1061 = vpop.permute.xlu0 %1060
        %1062 = vrot.lane.b32.xlu0 %v711, 64
        %v1063 = vpop.permute.xlu0 %1062
        %1064 = vrot.lane.b32.xlu0 %v713, 64
        %v1065 = vpop.permute.xlu0 %1064
        %v1074 = vcombine.low %v1051, %v1059
        %v1075 = vcombine.high %v1051, %v1059
        %v1077 = vunpack.c.l.s4 1983009808
        %v1078 = vunpack.c.0.s8 %v1077
        %v1079 = vlaneseq
        %v1080 = vshrl.u32 %v1079, 7
        %v1081 = vsub.s32 %v1078, %v1080
        %v1082 = vrot.slane %v1074, %v1081
        %v1084 = vunpack.c.l.s4 1983009808
        %v1085 = vunpack.c.0.s8 %v1084
        %v1086 = vlaneseq
        %v1087 = vshrl.u32 %v1086, 7
        %v1088 = vsub.s32 %v1085, %v1087
        %v1089 = vrot.slane %v1075, %v1088
        %v1090 = vcombine.low %v1055, %v1063
        %v1091 = vcombine.high %v1055, %v1063
        %v1093 = vunpack.c.l.s4 1983009808
        %v1094 = vunpack.c.0.s8 %v1093
        %v1095 = vlaneseq
        %v1096 = vshrl.u32 %v1095, 7
        %v1097 = vsub.s32 %v1094, %v1096
        %v1098 = vrot.slane %v1090, %v1097
        %v1100 = vunpack.c.l.s4 1983009808
        %v1101 = vunpack.c.0.s8 %v1100
        %v1102 = vlaneseq
        %v1103 = vshrl.u32 %v1102, 7
        %v1104 = vsub.s32 %v1101, %v1103
        %v1105 = vrot.slane %v1091, %v1104
        %v1106 = vcombine.low %v1082, %v1098
        %v1107 = vcombine.high %v1082, %v1098
        %v1109 = vunpack.c.l.s4 1934713408
        %v1110 = vunpack.c.0.s8 %v1109
        %v1111 = vlaneseq
        %v1112 = vshrl.u32 %v1111, 7
        %v1113 = vsub.s32 %v1110, %v1112
        %v1114 = vrot.slane %v1106, %v1113
        %v1116 = vunpack.c.l.s4 1934713408
        %v1117 = vunpack.c.0.s8 %v1116
        %v1118 = vlaneseq
        %v1119 = vshrl.u32 %v1118, 7
        %v1120 = vsub.s32 %v1117, %v1119
        %v1121 = vrot.slane %v1107, %v1120
        %v1122 = vcombine.low %v1089, %v1105
        %v1123 = vcombine.high %v1089, %v1105
        %v1125 = vunpack.c.l.s4 1934713408
        %v1126 = vunpack.c.0.s8 %v1125
        %v1127 = vlaneseq
        %v1128 = vshrl.u32 %v1127, 7
        %v1129 = vsub.s32 %v1126, %v1128
        %v1130 = vrot.slane %v1122, %v1129
        %v1132 = vunpack.c.l.s4 1934713408
        %v1133 = vunpack.c.0.s8 %v1132
        %v1134 = vlaneseq
        %v1135 = vshrl.u32 %v1134, 7
        %v1136 = vsub.s32 %v1133, %v1135
        %v1137 = vrot.slane %v1123, %v1136
        %v1138 = vcombine.high %v1114, 0.0
        %v1139 = vcombine.high %v1121, 0.0
        %v1140 = vcombine.high %v1130, 0.0
        %v1141 = vcombine.high %v1137, 0.0
        %v1142 = vcombine.low %v1053, %v1061
        %v1143 = vcombine.high %v1053, %v1061
        %v1145 = vunpack.c.l.s4 1983009808
        %v1146 = vunpack.c.0.s8 %v1145
        %v1147 = vlaneseq
        %v1148 = vshrl.u32 %v1147, 7
        %v1149 = vsub.s32 %v1146, %v1148
        %v1150 = vrot.slane %v1142, %v1149
        %v1152 = vunpack.c.l.s4 1983009808
        %v1153 = vunpack.c.0.s8 %v1152
        %v1154 = vlaneseq
        %v1155 = vshrl.u32 %v1154, 7
        %v1156 = vsub.s32 %v1153, %v1155
        %v1157 = vrot.slane %v1143, %v1156
        %v1158 = vcombine.low %v1057, %v1065
        %v1159 = vcombine.high %v1057, %v1065
        %v1161 = vunpack.c.l.s4 1983009808
        %v1162 = vunpack.c.0.s8 %v1161
        %v1163 = vlaneseq
        %v1164 = vshrl.u32 %v1163, 7
        %v1165 = vsub.s32 %v1162, %v1164
        %v1166 = vrot.slane %v1158, %v1165
        %v1168 = vunpack.c.l.s4 1983009808
        %v1169 = vunpack.c.0.s8 %v1168
        %v1170 = vlaneseq
        %v1171 = vshrl.u32 %v1170, 7
        %v1172 = vsub.s32 %v1169, %v1171
        %v1173 = vrot.slane %v1159, %v1172
        %v1174 = vcombine.low %v1150, %v1166
        %v1175 = vcombine.high %v1150, %v1166
        %v1177 = vunpack.c.l.s4 1934713408
        %v1178 = vunpack.c.0.s8 %v1177
        %v1179 = vlaneseq
        %v1180 = vshrl.u32 %v1179, 7
        %v1181 = vsub.s32 %v1178, %v1180
        %v1182 = vrot.slane %v1174, %v1181
        %v1184 = vunpack.c.l.s4 1934713408
        %v1185 = vunpack.c.0.s8 %v1184
        %v1186 = vlaneseq
        %v1187 = vshrl.u32 %v1186, 7
        %v1188 = vsub.s32 %v1185, %v1187
        %v1189 = vrot.slane %v1175, %v1188
        %v1190 = vcombine.low %v1157, %v1173
        %v1191 = vcombine.high %v1157, %v1173
        %v1193 = vunpack.c.l.s4 1934713408
        %v1194 = vunpack.c.0.s8 %v1193
        %v1195 = vlaneseq
        %v1196 = vshrl.u32 %v1195, 7
        %v1197 = vsub.s32 %v1194, %v1196
        %v1198 = vrot.slane %v1190, %v1197
        %v1200 = vunpack.c.l.s4 1934713408
        %v1201 = vunpack.c.0.s8 %v1200
        %v1202 = vlaneseq
        %v1203 = vshrl.u32 %v1202, 7
        %v1204 = vsub.s32 %v1201, %v1203
        %v1205 = vrot.slane %v1191, %v1204
        %v1206 = vcombine.high %v1182, 0.0
        %v1207 = vcombine.high %v1189, 0.0
        %v1208 = vcombine.high %v1198, 0.0
        %v1209 = vcombine.high %v1205, 0.0
        %v1210 = vcombine.low %v1114, %v1121
        %v1212 = vunpack.c.l.s4 1983009808
        %v1213 = vunpack.c.0.s8 %v1212
        %v1214 = vlaneseq
        %v1215 = vshrl.u32 %v1214, 7
        %v1216 = vsub.s32 %v1213, %v1215
        %v1217 = vrot.slane %v1210, %v1216
        %v1218 = vcombine.low %v1138, %v1139
        %v1220 = vunpack.c.l.s4 1983009808
        %v1221 = vunpack.c.0.s8 %v1220
        %v1222 = vlaneseq
        %v1223 = vshrl.u32 %v1222, 7
        %v1224 = vsub.s32 %v1221, %v1223
        %v1225 = vrot.slane %v1218, %v1224
        %v1226 = vcombine.low %v1130, %v1137
        %v1228 = vunpack.c.l.s4 1983009808
        %v1229 = vunpack.c.0.s8 %v1228
        %v1230 = vlaneseq
        %v1231 = vshrl.u32 %v1230, 7
        %v1232 = vsub.s32 %v1229, %v1231
        %v1233 = vrot.slane %v1226, %v1232
        %v1234 = vcombine.low %v1140, %v1141
        %v1236 = vunpack.c.l.s4 1983009808
        %v1237 = vunpack.c.0.s8 %v1236
        %v1238 = vlaneseq
        %v1239 = vshrl.u32 %v1238, 7
        %v1240 = vsub.s32 %v1237, %v1239
        %v1241 = vrot.slane %v1234, %v1240
        %v1242 = vcombine.low %v1217, %v1225
        %v1243 = vcombine.high %v1217, %v1225
        %v1245 = vunpack.c.l.s4 1934713408
        %v1246 = vunpack.c.0.s8 %v1245
        %v1247 = vlaneseq
        %v1248 = vshrl.u32 %v1247, 7
        %v1249 = vsub.s32 %v1246, %v1248
        %v1250 = vrot.slane %v1242, %v1249
        %v1252 = vunpack.c.l.s4 1934713408
        %v1253 = vunpack.c.0.s8 %v1252
        %v1254 = vlaneseq
        %v1255 = vshrl.u32 %v1254, 7
        %v1256 = vsub.s32 %v1253, %v1255
        %v1257 = vrot.slane %v1243, %v1256
        %v1258 = vcombine.low %v1233, %v1241
        %v1259 = vcombine.high %v1233, %v1241
        %v1261 = vunpack.c.l.s4 1934713408
        %v1262 = vunpack.c.0.s8 %v1261
        %v1263 = vlaneseq
        %v1264 = vshrl.u32 %v1263, 7
        %v1265 = vsub.s32 %v1262, %v1264
        %v1266 = vrot.slane %v1258, %v1265
        %v1268 = vunpack.c.l.s4 1934713408
        %v1269 = vunpack.c.0.s8 %v1268
        %v1270 = vlaneseq
        %v1271 = vshrl.u32 %v1270, 7
        %v1272 = vsub.s32 %v1269, %v1271
        %v1273 = vrot.slane %v1259, %v1272
        %v1274 = vcombine.low %v1250, %v1266
        %v1275 = vcombine.high %v1250, %v1266
        %v1276 = vcombine.low %v1257, %v1273
        %v1277 = vcombine.high %v1257, %v1273
        %v1278 = vcombine.low %v1182, %v1189
        %v1280 = vunpack.c.l.s4 1983009808
        %v1281 = vunpack.c.0.s8 %v1280
        %v1282 = vlaneseq
        %v1283 = vshrl.u32 %v1282, 7
        %v1284 = vsub.s32 %v1281, %v1283
        %v1285 = vrot.slane %v1278, %v1284
        %v1286 = vcombine.low %v1206, %v1207
        %v1288 = vunpack.c.l.s4 1983009808
        %v1289 = vunpack.c.0.s8 %v1288
        %v1290 = vlaneseq
        %v1291 = vshrl.u32 %v1290, 7
        %v1292 = vsub.s32 %v1289, %v1291
        %v1293 = vrot.slane %v1286, %v1292
        %v1294 = vcombine.low %v1198, %v1205
        %v1296 = vunpack.c.l.s4 1983009808
        %v1297 = vunpack.c.0.s8 %v1296
        %v1298 = vlaneseq
        %v1299 = vshrl.u32 %v1298, 7
        %v1300 = vsub.s32 %v1297, %v1299
        %v1301 = vrot.slane %v1294, %v1300
        %v1302 = vcombine.low %v1208, %v1209
        %v1304 = vunpack.c.l.s4 1983009808
        %v1305 = vunpack.c.0.s8 %v1304
        %v1306 = vlaneseq
        %v1307 = vshrl.u32 %v1306, 7
        %v1308 = vsub.s32 %v1305, %v1307
        %v1309 = vrot.slane %v1302, %v1308
        %v1310 = vcombine.low %v1285, %v1293
        %v1311 = vcombine.high %v1285, %v1293
        %v1313 = vunpack.c.l.s4 1934713408
        %v1314 = vunpack.c.0.s8 %v1313
        %v1315 = vlaneseq
        %v1316 = vshrl.u32 %v1315, 7
        %v1317 = vsub.s32 %v1314, %v1316
        %v1318 = vrot.slane %v1310, %v1317
        %v1320 = vunpack.c.l.s4 1934713408
        %v1321 = vunpack.c.0.s8 %v1320
        %v1322 = vlaneseq
        %v1323 = vshrl.u32 %v1322, 7
        %v1324 = vsub.s32 %v1321, %v1323
        %v1325 = vrot.slane %v1311, %v1324
        %v1326 = vcombine.low %v1301, %v1309
        %v1327 = vcombine.high %v1301, %v1309
        %v1329 = vunpack.c.l.s4 1934713408
        %v1330 = vunpack.c.0.s8 %v1329
        %v1331 = vlaneseq
        %v1332 = vshrl.u32 %v1331, 7
        %v1333 = vsub.s32 %v1330, %v1332
        %v1334 = vrot.slane %v1326, %v1333
        %v1336 = vunpack.c.l.s4 1934713408
        %v1337 = vunpack.c.0.s8 %v1336
        %v1338 = vlaneseq
        %v1339 = vshrl.u32 %v1338, 7
        %v1340 = vsub.s32 %v1337, %v1339
        %v1341 = vrot.slane %v1327, %v1340
        %v1342 = vcombine.low %v1318, %v1334
        %v1343 = vcombine.high %v1318, %v1334
        %v1344 = vcombine.low %v1325, %v1341
        %v1345 = vcombine.high %v1325, %v1341
        %v1346 = vpack.c.bf16 %v1342, %v1274
        %v1347 = vpack.c.bf16 %v1343, %v1275
        %v1348 = vpack.c.bf16 %v1344, %v1276
        %v1349 = vpack.c.bf16 %v1345, %v1277
        %v1354 = vunpack.c.l.b16 %v1346
        %v1355 = vunpack.c.h.b16 %v1346
        %v1356 = vunpack.c.l.b16 %v1347
        %v1357 = vunpack.c.h.b16 %v1347
        %v1358 = vunpack.c.l.b16 %v1348
        %v1359 = vunpack.c.h.b16 %v1348
        %v1360 = vunpack.c.l.b16 %v1349
        %v1361 = vunpack.c.h.b16 %v1349
        %v1362 = vpack.c.b16 %v1354, %v1354
        %v1363 = vpack.c.b16 %v1355, %v1355
        %v1364 = vpack.c.b16 %v1356, %v1356
        %v1365 = vpack.c.b16 %v1357, %v1357
        %v1366 = vpack.c.b16 %v1358, %v1358
        %v1367 = vpack.c.b16 %v1359, %v1359
        %v1368 = vpack.c.b16 %v1360, %v1360
        %v1369 = vpack.c.b16 %v1361, %v1361
        %1378 = vst.msk [vmem:[%s288] sm:$0xf] %vm691, %v1362
        %1379 = vst.msk [vmem:[%s288 + $0x4] sm:$0xf] %vm691, %v1363
        %1380 = vst.msk [vmem:[%s288 + $0x8] sm:$0xf] %vm691, %v1364
        %1381 = vst.msk [vmem:[%s288 + $0xc] sm:$0xf] %vm691, %v1365
        %1382 = vst.msk [vmem:[%s288 + $0x10] sm:$0xf] %vm691, %v1366
        %1383 = vst.msk [vmem:[%s288 + $0x14] sm:$0xf] %vm691, %v1367
        %1384 = vst.msk [vmem:[%s288 + $0x18] sm:$0xf] %vm691, %v1368
        %1385 = vst.msk [vmem:[%s288 + $0x1c] sm:$0xf] %vm691, %v1369
        %s1386 = sand.u32 %s113, 1
        %s1387 = sand.u32 %s113, 1
        %s1388 = smul.addr %s1387, 32
        %s1389 = scalar_lea.vmem [#allocation6], %s1388
        %s1390 = sand.u32 %s141, 1
        %s1391 = sand.u32 %s141, 1
        %s1392 = smul.addr %s1391, 32
        %s1393 = scalar_lea.vmem [#allocation7], %s1392
        %s1394 = sand.u32 %s169, 1
        %s1395 = sand.u32 %s169, 1
        %s1396 = smul.addr %s1395, 32
        %s1397 = scalar_lea.vmem [#allocation8], %s1396
        // Predicated region
        $region41: #{tpu_custom_call.1} parent=31 // pred_check
          %p1398 = pneg %p123
        $region42: #{tpu_custom_call.1} parent=31 // pred_check_branch
          %1400 = sbr.rel (%p1398) target = $region44
        $region43: #{tpu_custom_call.1} parent=31 // pred_region
          %s1401 = smul.u32 2, %s26
          %s1402 = smul.addr %s25, 16
          %s1403 = sadd.s32 %s1401, %s1402
          %s1404 = smul.addr %s1403, 4
          %s1405 = scalar_lea.vmem %s3, %s1404
          // Predicated region
          $region45: #{tpu_custom_call.1} parent=43 // pred_check
            _
          $region46: #{tpu_custom_call.1} parent=43 // pred_check_branch
            %1407 = sbr.rel (0) target = $region48
          $region47: #{tpu_custom_call.1} parent=43 // pred_region
            // Predicated region
            $region49: #{tpu_custom_call.1} parent=47 // pred_check
              _
            $region50: #{tpu_custom_call.1} parent=47 // pred_check_branch
              %1409 = sbr.rel target = $region52
            $region51: #{tpu_custom_call.1} parent=47 // pred_region
              // Predicated region
              $region64: #{tpu_custom_call.1} parent=51 // pred_check
                _
              $region65: #{tpu_custom_call.1} parent=51 // pred_check_branch
                %1438 = sbr.rel (0) target = $region67
              $region66: #{tpu_custom_call.1} parent=51 // pred_region
                loop: start=0, step=1, limit=1
                $region68: #{tpu_custom_call.1} parent=66 // loop_pre_header
                  _
                $region69: #{tpu_custom_call.1} parent=66 // loop_header
                  %s1440 = sphi 0, %s1444
                  %p1441 = scmp.ge.s32.totalorder %s1440, 1
                  %s1445 = sphi %s1389, %s1389
                  %s1446 = sphi %s1405, %s1405
                $region70: #{tpu_custom_call.1} parent=66 // loop_header_branch
                  %1443 = sbr.rel (%p1441) target = $region74
                $region71: #{tpu_custom_call.1} parent=66 // loop_body
                  _
                $region72: #{tpu_custom_call.1} parent=66 // loop_footer
                  %s1444 = sadd.s32 1, %s1440
                $region73: #{tpu_custom_call.1} parent=66 // loop_footer_branch
                  %1439 = sbr.rel target = $region69
                $region74: #{tpu_custom_call.1} parent=66 // loop_exit
                  _
                loop: start=0, step=1, limit=1
                $region75: #{tpu_custom_call.1} parent=66 // loop_pre_header
                  _
                $region76: #{tpu_custom_call.1} parent=66 // loop_header
                  %s1449 = sphi 0, %s1453
                  %p1450 = scmp.ge.s32.totalorder %s1449, 1
                  %s1454 = sphi %s1389, %s1389
                  %s1455 = sphi %s1405, %s1405
                $region77: #{tpu_custom_call.1} parent=66 // loop_header_branch
                  %1452 = sbr.rel (%p1450) target = $region81
                $region78: #{tpu_custom_call.1} parent=66 // loop_body
                  %v1456 = vld [vmem:[%s1454] sm:$0xf]
                  %1457 = vst [vmem:[%s1455] sm:$0xf] %v1456
                  %v1458 = vld [vmem:[%s1454 + $0x4] sm:$0xf]
                  %1459 = vst [vmem:[%s1455 + $0x4] sm:$0xf] %v1458
                  %v1460 = vld [vmem:[%s1454 + $0x8] sm:$0xf]
                  %1461 = vst [vmem:[%s1455 + $0x10] sm:$0xf] %v1460
                  %v1462 = vld [vmem:[%s1454 + $0xc] sm:$0xf]
                  %1463 = vst [vmem:[%s1455 + $0x14] sm:$0xf] %v1462
                  %v1464 = vld [vmem:[%s1454 + $0x10] sm:$0xf]
                  %1465 = vst [vmem:[%s1455 + $0x20] sm:$0xf] %v1464
                  %v1466 = vld [vmem:[%s1454 + $0x14] sm:$0xf]
                  %1467 = vst [vmem:[%s1455 + $0x24] sm:$0xf] %v1466
                  %v1468 = vld [vmem:[%s1454 + $0x18] sm:$0xf]
                  %1469 = vst [vmem:[%s1455 + $0x30] sm:$0xf] %v1468
                  %v1470 = vld [vmem:[%s1454 + $0x1c] sm:$0xf]
                  %1471 = vst [vmem:[%s1455 + $0x34] sm:$0xf] %v1470
                $region79: #{tpu_custom_call.1} parent=66 // loop_footer
                  %s1453 = sadd.s32 1, %s1449
                $region80: #{tpu_custom_call.1} parent=66 // loop_footer_branch
                  %1448 = sbr.rel target = $region76
                $region81: #{tpu_custom_call.1} parent=66 // loop_exit
                  _
              $region67: #{tpu_custom_call.1} parent=51 // pred_fallthru
                _
            $region52: #{tpu_custom_call.1} parent=47 // pred_fallthru
              _
            // Predicated region
            $region53: #{tpu_custom_call.1} parent=47 // pred_check
              _
            $region54: #{tpu_custom_call.1} parent=47 // pred_check_branch
              %1411 = sbr.rel (0) target = $region56
            $region55: #{tpu_custom_call.1} parent=47 // pred_region
              loop: start=0, step=1, limit=1
              $region57: #{tpu_custom_call.1} parent=55 // loop_pre_header
                _
              $region58: #{tpu_custom_call.1} parent=55 // loop_header
                %s1414 = sphi 0, %s1418
                %p1415 = scmp.ge.s32.totalorder %s1414, 1
                %s1419 = sphi %s1389, %s1389
                %s1420 = sphi %s1405, %s1405
              $region59: #{tpu_custom_call.1} parent=55 // loop_header_branch
                %1417 = sbr.rel (%p1415) target = $region63
              $region60: #{tpu_custom_call.1} parent=55 // loop_body
                %v1421 = vld [vmem:[%s1419] sm:$0xf]
                %1422 = vst [vmem:[%s1420] sm:$0xf] %v1421
                %v1423 = vld [vmem:[%s1419 + $0x4] sm:$0xf]
                %1424 = vst [vmem:[%s1420 + $0x4] sm:$0xf] %v1423
                %v1425 = vld [vmem:[%s1419 + $0x8] sm:$0xf]
                %1426 = vst [vmem:[%s1420 + $0x10] sm:$0xf] %v1425
                %v1427 = vld [vmem:[%s1419 + $0xc] sm:$0xf]
                %1428 = vst [vmem:[%s1420 + $0x14] sm:$0xf] %v1427
                %v1429 = vld [vmem:[%s1419 + $0x10] sm:$0xf]
                %1430 = vst [vmem:[%s1420 + $0x20] sm:$0xf] %v1429
                %v1431 = vld [vmem:[%s1419 + $0x14] sm:$0xf]
                %1432 = vst [vmem:[%s1420 + $0x24] sm:$0xf] %v1431
                %v1433 = vld [vmem:[%s1419 + $0x18] sm:$0xf]
                %1434 = vst [vmem:[%s1420 + $0x30] sm:$0xf] %v1433
                %v1435 = vld [vmem:[%s1419 + $0x1c] sm:$0xf]
                %1436 = vst [vmem:[%s1420 + $0x34] sm:$0xf] %v1435
              $region61: #{tpu_custom_call.1} parent=55 // loop_footer
                %s1418 = sadd.s32 1, %s1414
              $region62: #{tpu_custom_call.1} parent=55 // loop_footer_branch
                %1413 = sbr.rel target = $region58
              $region63: #{tpu_custom_call.1} parent=55 // loop_exit
                _
            $region56: #{tpu_custom_call.1} parent=47 // pred_fallthru
              _
          $region48: #{tpu_custom_call.1} parent=43 // pred_fallthru
            _
          %1472 = vnop
        $region44: #{tpu_custom_call.1} parent=31 // pred_fallthru
          _
        // Predicated region
        $region82: #{tpu_custom_call.1} parent=31 // pred_check
          %p1473 = pneg %p151
        $region83: #{tpu_custom_call.1} parent=31 // pred_check_branch
          %1475 = sbr.rel (%p1473) target = $region85
        $region84: #{tpu_custom_call.1} parent=31 // pred_region
          %s1476 = smul.u32 2, %s26
          %s1477 = smul.addr %s25, 16
          %s1478 = sadd.s32 %s1476, %s1477
          %s1479 = smul.addr %s1478, 4
          %s1480 = scalar_lea.vmem %s4, %s1479
          // Predicated region
          $region86: #{tpu_custom_call.1} parent=84 // pred_check
            _
          $region87: #{tpu_custom_call.1} parent=84 // pred_check_branch
            %1482 = sbr.rel (0) target = $region89
          $region88: #{tpu_custom_call.1} parent=84 // pred_region
            // Predicated region
            $region90: #{tpu_custom_call.1} parent=88 // pred_check
              _
            $region91: #{tpu_custom_call.1} parent=88 // pred_check_branch
              %1484 = sbr.rel target = $region93
            $region92: #{tpu_custom_call.1} parent=88 // pred_region
              // Predicated region
              $region105: #{tpu_custom_call.1} parent=92 // pred_check
                _
              $region106: #{tpu_custom_call.1} parent=92 // pred_check_branch
                %1513 = sbr.rel (0) target = $region108
              $region107: #{tpu_custom_call.1} parent=92 // pred_region
                loop: start=0, step=1, limit=1
                $region109: #{tpu_custom_call.1} parent=107 // loop_pre_header
                  _
                $region110: #{tpu_custom_call.1} parent=107 // loop_header
                  %s1515 = sphi 0, %s1519
                  %p1516 = scmp.ge.s32.totalorder %s1515, 1
                  %s1520 = sphi %s1393, %s1393
                  %s1521 = sphi %s1480, %s1480
                $region111: #{tpu_custom_call.1} parent=107 // loop_header_branch
                  %1518 = sbr.rel (%p1516) target = $region115
                $region112: #{tpu_custom_call.1} parent=107 // loop_body
                  _
                $region113: #{tpu_custom_call.1} parent=107 // loop_footer
                  %s1519 = sadd.s32 1, %s1515
                $region114: #{tpu_custom_call.1} parent=107 // loop_footer_branch
                  %1514 = sbr.rel target = $region110
                $region115: #{tpu_custom_call.1} parent=107 // loop_exit
                  _
                loop: start=0, step=1, limit=1
                $region116: #{tpu_custom_call.1} parent=107 // loop_pre_header
                  _
                $region117: #{tpu_custom_call.1} parent=107 // loop_header
                  %s1524 = sphi 0, %s1528
                  %p1525 = scmp.ge.s32.totalorder %s1524, 1
                  %s1529 = sphi %s1393, %s1393
                  %s1530 = sphi %s1480, %s1480
                $region118: #{tpu_custom_call.1} parent=107 // loop_header_branch
                  %1527 = sbr.rel (%p1525) target = $region122
                $region119: #{tpu_custom_call.1} parent=107 // loop_body
                  %v1531 = vld [vmem:[%s1529] sm:$0xf]
                  %1532 = vst [vmem:[%s1530] sm:$0xf] %v1531
                  %v1533 = vld [vmem:[%s1529 + $0x4] sm:$0xf]
                  %1534 = vst [vmem:[%s1530 + $0x4] sm:$0xf] %v1533
                  %v1535 = vld [vmem:[%s1529 + $0x8] sm:$0xf]
                  %1536 = vst [vmem:[%s1530 + $0x10] sm:$0xf] %v1535
                  %v1537 = vld [vmem:[%s1529 + $0xc] sm:$0xf]
                  %1538 = vst [vmem:[%s1530 + $0x14] sm:$0xf] %v1537
                  %v1539 = vld [vmem:[%s1529 + $0x10] sm:$0xf]
                  %1540 = vst [vmem:[%s1530 + $0x20] sm:$0xf] %v1539
                  %v1541 = vld [vmem:[%s1529 + $0x14] sm:$0xf]
                  %1542 = vst [vmem:[%s1530 + $0x24] sm:$0xf] %v1541
                  %v1543 = vld [vmem:[%s1529 + $0x18] sm:$0xf]
                  %1544 = vst [vmem:[%s1530 + $0x30] sm:$0xf] %v1543
                  %v1545 = vld [vmem:[%s1529 + $0x1c] sm:$0xf]
                  %1546 = vst [vmem:[%s1530 + $0x34] sm:$0xf] %v1545
                $region120: #{tpu_custom_call.1} parent=107 // loop_footer
                  %s1528 = sadd.s32 1, %s1524
                $region121: #{tpu_custom_call.1} parent=107 // loop_footer_branch
                  %1523 = sbr.rel target = $region117
                $region122: #{tpu_custom_call.1} parent=107 // loop_exit
                  _
              $region108: #{tpu_custom_call.1} parent=92 // pred_fallthru
                _
            $region93: #{tpu_custom_call.1} parent=88 // pred_fallthru
              _
            // Predicated region
            $region94: #{tpu_custom_call.1} parent=88 // pred_check
              _
            $region95: #{tpu_custom_call.1} parent=88 // pred_check_branch
              %1486 = sbr.rel (0) target = $region97
            $region96: #{tpu_custom_call.1} parent=88 // pred_region
              loop: start=0, step=1, limit=1
              $region98: #{tpu_custom_call.1} parent=96 // loop_pre_header
                _
              $region99: #{tpu_custom_call.1} parent=96 // loop_header
                %s1489 = sphi 0, %s1493
                %p1490 = scmp.ge.s32.totalorder %s1489, 1
                %s1494 = sphi %s1393, %s1393
                %s1495 = sphi %s1480, %s1480
              $region100: #{tpu_custom_call.1} parent=96 // loop_header_branch
                %1492 = sbr.rel (%p1490) target = $region104
              $region101: #{tpu_custom_call.1} parent=96 // loop_body
                %v1496 = vld [vmem:[%s1494] sm:$0xf]
                %1497 = vst [vmem:[%s1495] sm:$0xf] %v1496
                %v1498 = vld [vmem:[%s1494 + $0x4] sm:$0xf]
                %1499 = vst [vmem:[%s1495 + $0x4] sm:$0xf] %v1498
                %v1500 = vld [vmem:[%s1494 + $0x8] sm:$0xf]
                %1501 = vst [vmem:[%s1495 + $0x10] sm:$0xf] %v1500
                %v1502 = vld [vmem:[%s1494 + $0xc] sm:$0xf]
                %1503 = vst [vmem:[%s1495 + $0x14] sm:$0xf] %v1502
                %v1504 = vld [vmem:[%s1494 + $0x10] sm:$0xf]
                %1505 = vst [vmem:[%s1495 + $0x20] sm:$0xf] %v1504
                %v1506 = vld [vmem:[%s1494 + $0x14] sm:$0xf]
                %1507 = vst [vmem:[%s1495 + $0x24] sm:$0xf] %v1506
                %v1508 = vld [vmem:[%s1494 + $0x18] sm:$0xf]
                %1509 = vst [vmem:[%s1495 + $0x30] sm:$0xf] %v1508
                %v1510 = vld [vmem:[%s1494 + $0x1c] sm:$0xf]
                %1511 = vst [vmem:[%s1495 + $0x34] sm:$0xf] %v1510
              $region102: #{tpu_custom_call.1} parent=96 // loop_footer
                %s1493 = sadd.s32 1, %s1489
              $region103: #{tpu_custom_call.1} parent=96 // loop_footer_branch
                %1488 = sbr.rel target = $region99
              $region104: #{tpu_custom_call.1} parent=96 // loop_exit
                _
            $region97: #{tpu_custom_call.1} parent=88 // pred_fallthru
              _
          $region89: #{tpu_custom_call.1} parent=84 // pred_fallthru
            _
          %1547 = vnop
        $region85: #{tpu_custom_call.1} parent=31 // pred_fallthru
          _
        // Predicated region
        $region123: #{tpu_custom_call.1} parent=31 // pred_check
          %p1548 = pneg %p179
        $region124: #{tpu_custom_call.1} parent=31 // pred_check_branch
          %1550 = sbr.rel (%p1548) target = $region126
        $region125: #{tpu_custom_call.1} parent=31 // pred_region
          %s1551 = smul.u32 2, %s26
          %s1552 = smul.addr %s25, 16
          %s1553 = sadd.s32 %s1551, %s1552
          %s1554 = smul.addr %s1553, 4
          %s1555 = scalar_lea.vmem %s5, %s1554
          // Predicated region
          $region127: #{tpu_custom_call.1} parent=125 // pred_check
            _
          $region128: #{tpu_custom_call.1} parent=125 // pred_check_branch
            %1557 = sbr.rel (0) target = $region130
          $region129: #{tpu_custom_call.1} parent=125 // pred_region
            // Predicated region
            $region131: #{tpu_custom_call.1} parent=129 // pred_check
              _
            $region132: #{tpu_custom_call.1} parent=129 // pred_check_branch
              %1559 = sbr.rel target = $region134
            $region133: #{tpu_custom_call.1} parent=129 // pred_region
              // Predicated region
              $region146: #{tpu_custom_call.1} parent=133 // pred_check
                _
              $region147: #{tpu_custom_call.1} parent=133 // pred_check_branch
                %1588 = sbr.rel (0) target = $region149
              $region148: #{tpu_custom_call.1} parent=133 // pred_region
                loop: start=0, step=1, limit=1
                $region150: #{tpu_custom_call.1} parent=148 // loop_pre_header
                  _
                $region151: #{tpu_custom_call.1} parent=148 // loop_header
                  %s1590 = sphi 0, %s1594
                  %p1591 = scmp.ge.s32.totalorder %s1590, 1
                  %s1595 = sphi %s1397, %s1397
                  %s1596 = sphi %s1555, %s1555
                $region152: #{tpu_custom_call.1} parent=148 // loop_header_branch
                  %1593 = sbr.rel (%p1591) target = $region156
                $region153: #{tpu_custom_call.1} parent=148 // loop_body
                  _
                $region154: #{tpu_custom_call.1} parent=148 // loop_footer
                  %s1594 = sadd.s32 1, %s1590
                $region155: #{tpu_custom_call.1} parent=148 // loop_footer_branch
                  %1589 = sbr.rel target = $region151
                $region156: #{tpu_custom_call.1} parent=148 // loop_exit
                  _
                loop: start=0, step=1, limit=1
                $region157: #{tpu_custom_call.1} parent=148 // loop_pre_header
                  _
                $region158: #{tpu_custom_call.1} parent=148 // loop_header
                  %s1599 = sphi 0, %s1603
                  %p1600 = scmp.ge.s32.totalorder %s1599, 1
                  %s1604 = sphi %s1397, %s1397
                  %s1605 = sphi %s1555, %s1555
                $region159: #{tpu_custom_call.1} parent=148 // loop_header_branch
                  %1602 = sbr.rel (%p1600) target = $region163
                $region160: #{tpu_custom_call.1} parent=148 // loop_body
                  %v1606 = vld [vmem:[%s1604] sm:$0xf]
                  %1607 = vst [vmem:[%s1605] sm:$0xf] %v1606
                  %v1608 = vld [vmem:[%s1604 + $0x4] sm:$0xf]
                  %1609 = vst [vmem:[%s1605 + $0x4] sm:$0xf] %v1608
                  %v1610 = vld [vmem:[%s1604 + $0x8] sm:$0xf]
                  %1611 = vst [vmem:[%s1605 + $0x10] sm:$0xf] %v1610
                  %v1612 = vld [vmem:[%s1604 + $0xc] sm:$0xf]
                  %1613 = vst [vmem:[%s1605 + $0x14] sm:$0xf] %v1612
                  %v1614 = vld [vmem:[%s1604 + $0x10] sm:$0xf]
                  %1615 = vst [vmem:[%s1605 + $0x20] sm:$0xf] %v1614
                  %v1616 = vld [vmem:[%s1604 + $0x14] sm:$0xf]
                  %1617 = vst [vmem:[%s1605 + $0x24] sm:$0xf] %v1616
                  %v1618 = vld [vmem:[%s1604 + $0x18] sm:$0xf]
                  %1619 = vst [vmem:[%s1605 + $0x30] sm:$0xf] %v1618
                  %v1620 = vld [vmem:[%s1604 + $0x1c] sm:$0xf]
                  %1621 = vst [vmem:[%s1605 + $0x34] sm:$0xf] %v1620
                $region161: #{tpu_custom_call.1} parent=148 // loop_footer
                  %s1603 = sadd.s32 1, %s1599
                $region162: #{tpu_custom_call.1} parent=148 // loop_footer_branch
                  %1598 = sbr.rel target = $region158
                $region163: #{tpu_custom_call.1} parent=148 // loop_exit
                  _
              $region149: #{tpu_custom_call.1} parent=133 // pred_fallthru
                _
            $region134: #{tpu_custom_call.1} parent=129 // pred_fallthru
              _
            // Predicated region
            $region135: #{tpu_custom_call.1} parent=129 // pred_check
              _
            $region136: #{tpu_custom_call.1} parent=129 // pred_check_branch
              %1561 = sbr.rel (0) target = $region138
            $region137: #{tpu_custom_call.1} parent=129 // pred_region
              loop: start=0, step=1, limit=1
              $region139: #{tpu_custom_call.1} parent=137 // loop_pre_header
                _
              $region140: #{tpu_custom_call.1} parent=137 // loop_header
                %s1564 = sphi 0, %s1568
                %p1565 = scmp.ge.s32.totalorder %s1564, 1
                %s1569 = sphi %s1397, %s1397
                %s1570 = sphi %s1555, %s1555
              $region141: #{tpu_custom_call.1} parent=137 // loop_header_branch
                %1567 = sbr.rel (%p1565) target = $region145
              $region142: #{tpu_custom_call.1} parent=137 // loop_body
                %v1571 = vld [vmem:[%s1569] sm:$0xf]
                %1572 = vst [vmem:[%s1570] sm:$0xf] %v1571
                %v1573 = vld [vmem:[%s1569 + $0x4] sm:$0xf]
                %1574 = vst [vmem:[%s1570 + $0x4] sm:$0xf] %v1573
                %v1575 = vld [vmem:[%s1569 + $0x8] sm:$0xf]
                %1576 = vst [vmem:[%s1570 + $0x10] sm:$0xf] %v1575
                %v1577 = vld [vmem:[%s1569 + $0xc] sm:$0xf]
                %1578 = vst [vmem:[%s1570 + $0x14] sm:$0xf] %v1577
                %v1579 = vld [vmem:[%s1569 + $0x10] sm:$0xf]
                %1580 = vst [vmem:[%s1570 + $0x20] sm:$0xf] %v1579
                %v1581 = vld [vmem:[%s1569 + $0x14] sm:$0xf]
                %1582 = vst [vmem:[%s1570 + $0x24] sm:$0xf] %v1581
                %v1583 = vld [vmem:[%s1569 + $0x18] sm:$0xf]
                %1584 = vst [vmem:[%s1570 + $0x30] sm:$0xf] %v1583
                %v1585 = vld [vmem:[%s1569 + $0x1c] sm:$0xf]
                %1586 = vst [vmem:[%s1570 + $0x34] sm:$0xf] %v1585
              $region143: #{tpu_custom_call.1} parent=137 // loop_footer
                %s1568 = sadd.s32 1, %s1564
              $region144: #{tpu_custom_call.1} parent=137 // loop_footer_branch
                %1563 = sbr.rel target = $region140
              $region145: #{tpu_custom_call.1} parent=137 // loop_exit
                _
            $region138: #{tpu_custom_call.1} parent=129 // pred_fallthru
              _
          $region130: #{tpu_custom_call.1} parent=125 // pred_fallthru
            _
          %1622 = vnop
        $region126: #{tpu_custom_call.1} parent=31 // pred_fallthru
          _
      $region32: #{tpu_custom_call.1} parent=5 // pred_fallthru
        _
      %p1623 = scmp.le.s32.totalorder 2, %s16
      // Predicated region
      $region164: #{tpu_custom_call.1} parent=5 // pred_check
        %p1624 = pneg %p1623
      $region165: #{tpu_custom_call.1} parent=5 // pred_check_branch
        %1626 = sbr.rel (%p1624) target = $region167
      $region166: #{tpu_custom_call.1} parent=5 // pred_region
        %s1627 = ssub.s32 %s16, 2
        // Predicated region
        $region168: #{tpu_custom_call.1} parent=166 // pred_check
          %p1628 = pneg %p129
        $region169: #{tpu_custom_call.1} parent=166 // pred_check_branch
          %1630 = sbr.rel (%p1628) target = $region171
        $region170: #{tpu_custom_call.1} parent=166 // pred_region
          %s1631 = sand.u32 %s114, 1
          %s1632 = sand.u32 %s114, 1
          %s1633 = smul.addr %s1632, 32
          %s1634 = scalar_lea.vmem [#allocation6], %s1633
        $region171: #{tpu_custom_call.1} parent=166 // pred_fallthru
          _
        // Predicated region
        $region172: #{tpu_custom_call.1} parent=166 // pred_check
          %p1635 = pneg %p157
        $region173: #{tpu_custom_call.1} parent=166 // pred_check_branch
          %1637 = sbr.rel (%p1635) target = $region175
        $region174: #{tpu_custom_call.1} parent=166 // pred_region
          %s1638 = sand.u32 %s142, 1
          %s1639 = sand.u32 %s142, 1
          %s1640 = smul.addr %s1639, 32
          %s1641 = scalar_lea.vmem [#allocation7], %s1640
        $region175: #{tpu_custom_call.1} parent=166 // pred_fallthru
          _
        // Predicated region
        $region176: #{tpu_custom_call.1} parent=166 // pred_check
          %p1642 = pneg %p185
        $region177: #{tpu_custom_call.1} parent=166 // pred_check_branch
          %1644 = sbr.rel (%p1642) target = $region179
        $region178: #{tpu_custom_call.1} parent=166 // pred_region
          %s1645 = sand.u32 %s170, 1
          %s1646 = sand.u32 %s170, 1
          %s1647 = smul.addr %s1646, 32
          %s1648 = scalar_lea.vmem [#allocation8], %s1647
        $region179: #{tpu_custom_call.1} parent=166 // pred_fallthru
          _
      $region167: #{tpu_custom_call.1} parent=5 // pred_fallthru
        _
    $region6: #{tpu_custom_call.1} parent=1 // loop_footer
      %s20 = sadd.s32 1, %s16
    $region7: #{tpu_custom_call.1} parent=1 // loop_footer_branch
      %15 = sbr.rel target = $region3
    $region8: #{tpu_custom_call.1} parent=1 // loop_exit
      _
    %1649 = vsyncpa [#allocation3], 1
    %s1650 = scalar_lea.sflag [#allocation3], 1
    %1651 = vsyncpa %s1650, 1
    %1652 = vsyncpa [#allocation5], 1

</llo_original>
